<compile_context>
chip_gen: v7x
topology: tpu7x:2x2x1
jax: 0.10.0
libtpu: 0.0.40
codegen_flags: <defaults>
</compile_context>

<pallas_src>
import functools

import jax
import jax.numpy as jnp
from jax import lax
from jax.experimental import pallas as pl
from jax.experimental.pallas import tpu as pltpu

C_IN = 256     # input / output channels (fixed by the module)
C_MID = 128    # bottleneck channels
EPS = 1e-5
NEG_SLOPE = 0.1


def _leaky(v):
    # Equivalent to LeakyReLU(0.1) for slope in (0, 1): mul + max (2 VPU ops).
    return jnp.maximum(v, NEG_SLOPE * v)


def resblock_kernel(x_ref, w1_ref, b1_ref, w2_ref, b2_ref, o_ref, y1p_ref):
    """One batch element per grid step (NHWC).

    x_ref  : (1, H, W, 256)   f32 input tile
    w1_ref : (256, 128)       bf16 1x1 conv weight with BN1 scale folded in
    b1_ref : (1, 128)         f32 folded conv1 bias + BN1 shift
    w2_ref : (3, 384, 256)    bf16 3x3 conv weight, kx taps grouped (K=384),
                              BN2 scale folded in
    b2_ref : (1, 256)         f32 folded conv2 bias + BN2 shift
    o_ref  : (1, H, W, 256)   f32 output tile
    y1p_ref: (H+2, W+2, 128)  f32 scratch holding the zero-haloed conv1 output
    """
    H, W = x_ref.shape[1], x_ref.shape[2]
    x = x_ref[0]                                           # (H, W, 256) f32

    # ---- conv1 (1x1): bf16 MXU matmul, f32 accumulation ----
    xm = x.reshape(H * W, C_IN).astype(jnp.bfloat16)
    y1 = jnp.dot(xm, w1_ref[...], preferred_element_type=jnp.float32)
    y1 = _leaky(y1 + b1_ref[...])                          # (H*W, 128) f32

    # ---- write conv1 output into the zero-haloed scratch ----
    # Only the thin halo borders are (re-)zeroed each step; the interior is
    # overwritten with the new y1.  Re-zeroing every step keeps the kernel
    # correct even if the "parallel" grid axis is split across cores (scratch
    # is not guaranteed zero-initialized).
    zrow = jnp.zeros((1, W + 2, C_MID), jnp.float32)
    y1p_ref[0:1] = zrow
    y1p_ref[H + 1:H + 2] = zrow
    zcol = jnp.zeros((H + 2, 1, C_MID), jnp.float32)
    y1p_ref[:, 0:1, :] = zcol
    y1p_ref[:, W + 1:W + 2, :] = zcol
    y1p_ref[1:H + 1, 1:W + 1, :] = y1.reshape(H, W, C_MID)

    # Single cast of the padded activation to bf16 for the MXU.
    y1p = y1p_ref[...].astype(jnp.bfloat16)                # (H+2, W+2, 128)

    # ---- conv2 (3x3, pad=1): 3 matmuls with K = 3*128 = 384 ----
    # Accumulator is initialised with the folded bias (saves a VPU add).
    acc = jnp.broadcast_to(b2_ref[...], (H * W, C_IN))     # f32
    for ky in range(3):                                    # static unroll (3)
        a_ky = jnp.concatenate(
            [y1p[ky:ky + H, kx:kx + W, :].reshape(H * W, C_MID)
             for kx in range(3)],
            axis=-1)                                       # (H*W, 384) bf16
        acc = acc + jnp.dot(a_ky, w2_ref[ky],
                            preferred_element_type=jnp.float32)

    y2 = _leaky(acc)                                       # (H*W, 256) f32

    # ---- residual add (f32) ----
    o_ref[0] = (x + y2.reshape(H, W, C_IN)).astype(o_ref.dtype)


@jax.jit
def resblock3_child_forward(x_nchw, params):
    """x_nchw: (N, 256, H, W) float32. Returns (N, 256, H, W)."""
    N, C, H, W = x_nchw.shape
    assert C == C_IN

    # --- fold BN (inference mode) into per-channel scale/shift ---
    s1 = params["bn1_gamma"] / jnp.sqrt(params["bn1_var"] + EPS)          # (128,)
    b1 = (params["b1"] - params["bn1_mean"]) * s1 + params["bn1_beta"]    # (128,)
    s2 = params["bn2_gamma"] / jnp.sqrt(params["bn2_var"] + EPS)          # (256,)
    b2 = (params["b2"] - params["bn2_mean"]) * s2 + params["bn2_beta"]    # (256,)

    # --- fold scales into conv weights and cast to bf16 for the MXU ---
    # conv1 weight (128, 256, 1, 1) -> (256, 128), * s1 per output channel
    w1_mat = (params["w1"].reshape(C_MID, C_IN).T * s1[None, :]
              ).astype(jnp.bfloat16)
    # conv2 weight (256, 128, 3, 3) -> (ky, kx, Cin, Cout) -> (3, 3*128, 256)
    w2_t = jnp.transpose(params["w2"], (2, 3, 1, 0)).reshape(3, 3 * C_MID, C_IN)
    w2_mat = (w2_t * s2[None, None, :]).astype(jnp.bfloat16)

    x_nhwc = jnp.transpose(x_nchw, (0, 2, 3, 1)).astype(jnp.float32)

    # Advisory cost estimate for XLA's scheduler around the custom call.
    flops = 2 * N * H * W * (C_IN * C_MID + 9 * C_MID * C_IN)
    bytes_accessed = (2 * N * H * W * C_IN * 4                 # x + out (f32)
                      + (C_IN * C_MID + 9 * C_MID * C_IN) * 2  # weights (bf16)
                      + (C_MID + C_IN) * 4)                    # biases (f32)
    cost = pl.CostEstimate(flops=flops, transcendentals=0,
                           bytes_accessed=bytes_accessed)

    out_nhwc = pl.pallas_call(
        resblock_kernel,
        out_shape=jax.ShapeDtypeStruct((N, H, W, C_IN), jnp.float32),
        grid_spec=pltpu.PrefetchScalarGridSpec(
            num_scalar_prefetch=0,
            grid=(N,),
            in_specs=[
                pl.BlockSpec((1, H, W, C_IN), lambda n: (n, 0, 0, 0)),
                pl.BlockSpec((C_IN, C_MID), lambda n: (0, 0)),
                pl.BlockSpec((1, C_MID), lambda n: (0, 0)),
                pl.BlockSpec((3, 3 * C_MID, C_IN), lambda n: (0, 0, 0)),
                pl.BlockSpec((1, C_IN), lambda n: (0, 0)),
            ],
            out_specs=pl.BlockSpec((1, H, W, C_IN), lambda n: (n, 0, 0, 0)),
            scratch_shapes=[pltpu.VMEM((H + 2, W + 2, C_MID), jnp.float32)],
        ),
        compiler_params=pltpu.CompilerParams(
            dimension_semantics=("parallel",)),
        cost_estimate=cost,
    )(
        x_nhwc,
        w1_mat,
        b1.reshape(1, C_MID).astype(jnp.float32),
        w2_mat,
        b2.reshape(1, C_IN).astype(jnp.float32),
    )
    return jnp.transpose(out_nhwc, (0, 3, 1, 2))


def reference_forward(x_nchw, params):
    """Plain-JAX f32 reference (NCHW, lax conv) for verification."""
    def bn(v, g, b, m, var):
        g = g[None, :, None, None]
        b = b[None, :, None, None]
        m = m[None, :, None, None]
        var = var[None, :, None, None]
        return g * (v - m) / jnp.sqrt(var + EPS) + b

    dn = ("NCHW", "OIHW", "NCHW")
    y = lax.conv_general_dilated(x_nchw, params["w1"], (1, 1), "VALID",
                                 dimension_numbers=dn)
    y = y + params["b1"][None, :, None, None]
    y = bn(y, params["bn1_gamma"], params["bn1_beta"],
           params["bn1_mean"], params["bn1_var"])
    y = jnp.where(y > 0, y, NEG_SLOPE * y)

    y = lax.conv_general_dilated(y, params["w2"], (1, 1), ((1, 1), (1, 1)),
                                 dimension_numbers=dn)
    y = y + params["b2"][None, :, None, None]
    y = bn(y, params["bn2_gamma"], params["bn2_beta"],
           params["bn2_mean"], params["bn2_var"])
    y = jnp.where(y > 0, y, NEG_SLOPE * y)
    return x_nchw + y


def make_params(key):
    ks = jax.random.split(key, 10)
    p = {
        "w1": 0.05 * jax.random.normal(ks[0], (C_MID, C_IN, 1, 1), jnp.float32),
        "b1": 0.05 * jax.random.normal(ks[1], (C_MID,), jnp.float32),
        "bn1_gamma": 1.0 + 0.1 * jax.random.normal(ks[2], (C_MID,), jnp.float32),
        "bn1_beta": 0.05 * jax.random.normal(ks[3], (C_MID,), jnp.float32),
        "bn1_mean": 0.05 * jax.random.normal(ks[4], (C_MID,), jnp.float32),
        "bn1_var": 0.5 + jnp.abs(jax.random.normal(ks[5], (C_MID,), jnp.float32)),
        "w2": 0.05 * jax.random.normal(ks[6], (C_IN, C_MID, 3, 3), jnp.float32),
        "b2": 0.05 * jax.random.normal(ks[7], (C_IN,), jnp.float32),
        "bn2_gamma": 1.0 + 0.1 * jax.random.normal(ks[8], (C_IN,), jnp.float32),
        "bn2_beta": 0.05 * jax.random.normal(ks[9], (C_IN,), jnp.float32),
        "bn2_mean": jnp.zeros((C_IN,), jnp.float32),
        "bn2_var": jnp.ones((C_IN,), jnp.float32),
    }
    return p


if __name__ == "__main__":
    key = jax.random.PRNGKey(0)
    pkey, xkey = jax.random.split(key)
    params = make_params(pkey)

    # Small spatial size; channel counts are fixed by the module (256 in/out).
    N, H, W = 2, 8, 8
    x = jax.random.normal(xkey, (N, C_IN, H, W), jnp.float32)

    out = jax.block_until_ready(resblock3_child_forward(x, params))
    ref = jax.block_until_ready(reference_forward(x, params))

    assert out.shape == (N, C_IN, H, W)
    # bf16 MXU operands (f32 accumulation) -> slightly looser tolerance than
    # the pure-f32 reference.
    assert jnp.allclose(out, ref, atol=5e-2, rtol=1e-2), (
        float(jnp.max(jnp.abs(out - ref))))
    print("KERNEL_OK")
</pallas_src>

<mosaic_0001>
module attributes {stable_mosaic.version = 11 : i64} {
  func.func @resblock_kernel(%arg0: i32, %arg1: memref<1x8x8x256xf32, #tpu.memory_space<vmem>>, %arg2: memref<256x128xbf16, #tpu.memory_space<vmem>>, %arg3: memref<1x128xf32, #tpu.memory_space<vmem>>, %arg4: memref<3x384x256xbf16, #tpu.memory_space<vmem>>, %arg5: memref<1x256xf32, #tpu.memory_space<vmem>>, %arg6: memref<1x8x8x256xf32, #tpu.memory_space<vmem>>, %arg7: memref<10x10x128xf32, #tpu.memory_space<vmem>>) attributes {dimension_semantics = [#tpu.dimension_semantics<parallel>], iteration_bounds = array<i64: 2>, scalar_prefetch = 0 : i64, scratch_operands = 1 : i64, tpu.core_type = #tpu.core_type<tc>, window_params = [{transform_indices = @transform_0, window_bounds = array<i64: 1, 8, 8, 256>}, {pipeline_mode = #tpu.pipeline_mode<synchronous>, transform_indices = @transform_1, window_bounds = array<i64: 256, 128>}, {pipeline_mode = #tpu.pipeline_mode<synchronous>, transform_indices = @transform_2, window_bounds = array<i64: 1, 128>}, {pipeline_mode = #tpu.pipeline_mode<synchronous>, transform_indices = @transform_3, window_bounds = array<i64: 3, 384, 256>}, {pipeline_mode = #tpu.pipeline_mode<synchronous>, transform_indices = @transform_4, window_bounds = array<i64: 1, 256>}, {transform_indices = @transform_5, window_bounds = array<i64: 1, 8, 8, 256>}]} {
    %c0 = arith.constant 0 : index
    %c0_0 = arith.constant 0 : index
    %c0_1 = arith.constant 0 : index
    %c0_2 = arith.constant 0 : index
    %0 = vector.load %arg1[%c0, %c0_0, %c0_1, %c0_2] : memref<1x8x8x256xf32, #tpu.memory_space<vmem>>, vector<1x8x8x256xf32>
    %1 = vector.shape_cast %0 : vector<1x8x8x256xf32> to vector<8x8x256xf32>
    %2 = vector.shape_cast %1 : vector<8x8x256xf32> to vector<64x256xf32>
    %3 = arith.truncf %2 : vector<64x256xf32> to vector<64x256xbf16>
    %c0_3 = arith.constant 0 : index
    %c0_4 = arith.constant 0 : index
    %4 = vector.load %arg2[%c0_3, %c0_4] : memref<256x128xbf16, #tpu.memory_space<vmem>>, vector<256x128xbf16>
    %cst = arith.constant dense<0.000000e+00> : vector<64x128xf32>
    %5 = tpu.matmul %3, %4, %cst {dimension_numbers = #tpu.dot_dimension_numbers<[1], [0], [0], [1], [0, 0, 1, 1], [], []>} : vector<64x256xbf16>, vector<256x128xbf16>, vector<64x128xf32> -> vector<64x128xf32>
    %c0_5 = arith.constant 0 : index
    %c0_6 = arith.constant 0 : index
    %6 = vector.load %arg3[%c0_5, %c0_6] : memref<1x128xf32, #tpu.memory_space<vmem>>, vector<1x128xf32>
    %7 = vector.broadcast %6 : vector<1x128xf32> to vector<64x128xf32>
    %8 = arith.addf %5, %7 : vector<64x128xf32>
    %cst_7 = arith.constant 1.000000e-01 : f32
    %9 = vector.broadcast %cst_7 : f32 to vector<64x128xf32>
    %10 = arith.mulf %9, %8 : vector<64x128xf32>
    %11 = arith.maximumf %8, %10 : vector<64x128xf32>
    %cst_8 = arith.constant 0.000000e+00 : f32
    %12 = vector.broadcast %cst_8 : f32 to vector<1x10x128xf32>
    %c0_9 = arith.constant 0 : index
    %c0_10 = arith.constant 0 : index
    %c0_11 = arith.constant 0 : index
    %13 = vector.load %arg7[%c0_9, %c0_10, %c0_11] : memref<10x10x128xf32, #tpu.memory_space<vmem>>, vector<1x10x128xf32>
    tpu.vector_store %arg7[%c0_9, %c0_10, %c0_11], %12 {strides = array<i32>} : memref<10x10x128xf32, #tpu.memory_space<vmem>>, vector<1x10x128xf32>,
    %c9 = arith.constant 9 : index
    %c0_12 = arith.constant 0 : index
    %c0_13 = arith.constant 0 : index
    %14 = vector.load %arg7[%c9, %c0_12, %c0_13] : memref<10x10x128xf32, #tpu.memory_space<vmem>>, vector<1x10x128xf32>
    tpu.vector_store %arg7[%c9, %c0_12, %c0_13], %12 {strides = array<i32>} : memref<10x10x128xf32, #tpu.memory_space<vmem>>, vector<1x10x128xf32>,
    %cst_14 = arith.constant 0.000000e+00 : f32
    %15 = vector.broadcast %cst_14 : f32 to vector<10x1x128xf32>
    %c0_15 = arith.constant 0 : index
    %c0_16 = arith.constant 0 : index
    %c0_17 = arith.constant 0 : index
    %16 = vector.load %arg7[%c0_15, %c0_16, %c0_17] : memref<10x10x128xf32, #tpu.memory_space<vmem>>, vector<10x1x128xf32>
    tpu.vector_store %arg7[%c0_15, %c0_16, %c0_17], %15 {strides = array<i32>} : memref<10x10x128xf32, #tpu.memory_space<vmem>>, vector<10x1x128xf32>,
    %c0_18 = arith.constant 0 : index
    %c9_19 = arith.constant 9 : index
    %c0_20 = arith.constant 0 : index
    %17 = vector.load %arg7[%c0_18, %c9_19, %c0_20] : memref<10x10x128xf32, #tpu.memory_space<vmem>>, vector<10x1x128xf32>
    tpu.vector_store %arg7[%c0_18, %c9_19, %c0_20], %15 {strides = array<i32>} : memref<10x10x128xf32, #tpu.memory_space<vmem>>, vector<10x1x128xf32>,
    %18 = vector.shape_cast %11 : vector<64x128xf32> to vector<8x8x128xf32>
    %c1 = arith.constant 1 : index
    %c1_21 = arith.constant 1 : index
    %c0_22 = arith.constant 0 : index
    %19 = vector.load %arg7[%c1, %c1_21, %c0_22] : memref<10x10x128xf32, #tpu.memory_space<vmem>>, vector<8x8x128xf32>
    tpu.vector_store %arg7[%c1, %c1_21, %c0_22], %18 {strides = array<i32>} : memref<10x10x128xf32, #tpu.memory_space<vmem>>, vector<8x8x128xf32>,
    %c0_23 = arith.constant 0 : index
    %c0_24 = arith.constant 0 : index
    %c0_25 = arith.constant 0 : index
    %20 = vector.load %arg7[%c0_23, %c0_24, %c0_25] : memref<10x10x128xf32, #tpu.memory_space<vmem>>, vector<10x10x128xf32>
    %21 = arith.truncf %20 : vector<10x10x128xf32> to vector<10x10x128xbf16>
    %c0_26 = arith.constant 0 : index
    %c0_27 = arith.constant 0 : index
    %22 = vector.load %arg5[%c0_26, %c0_27] : memref<1x256xf32, #tpu.memory_space<vmem>>, vector<1x256xf32>
    %23 = vector.shape_cast %22 : vector<1x256xf32> to vector<1x256xf32>
    %24 = vector.broadcast %23 : vector<1x256xf32> to vector<64x256xf32>
    %25 = vector.extract_strided_slice %21 {offsets = [0, 0, 0], sizes = [8, 8, 128], strides = [1, 1, 1]} : vector<10x10x128xbf16> to vector<8x8x128xbf16>
    %26 = vector.shape_cast %25 : vector<8x8x128xbf16> to vector<64x128xbf16>
    %27 = vector.extract_strided_slice %21 {offsets = [0, 1, 0], sizes = [8, 8, 128], strides = [1, 1, 1]} : vector<10x10x128xbf16> to vector<8x8x128xbf16>
    %28 = vector.shape_cast %27 : vector<8x8x128xbf16> to vector<64x128xbf16>
    %29 = vector.extract_strided_slice %21 {offsets = [0, 2, 0], sizes = [8, 8, 128], strides = [1, 1, 1]} : vector<10x10x128xbf16> to vector<8x8x128xbf16>
    %30 = vector.shape_cast %29 : vector<8x8x128xbf16> to vector<64x128xbf16>
    %31 = tpu.concatenate %26, %28, %30 in 1 : vector<64x128xbf16>, vector<64x128xbf16>, vector<64x128xbf16> -> vector<64x384xbf16>
    %c0_28 = arith.constant 0 : index
    %c0_29 = arith.constant 0 : index
    %c0_30 = arith.constant 0 : index
    %32 = vector.load %arg4[%c0_28, %c0_29, %c0_30] : memref<3x384x256xbf16, #tpu.memory_space<vmem>>, vector<1x384x256xbf16>
    %33 = vector.shape_cast %32 : vector<1x384x256xbf16> to vector<384x256xbf16>
    %cst_31 = arith.constant dense<0.000000e+00> : vector<64x256xf32>
    %34 = tpu.matmul %31, %33, %cst_31 {dimension_numbers = #tpu.dot_dimension_numbers<[1], [0], [0], [1], [0, 0, 1, 1], [], []>} : vector<64x384xbf16>, vector<384x256xbf16>, vector<64x256xf32> -> vector<64x256xf32>
    %35 = arith.addf %24, %34 : vector<64x256xf32>
    %36 = vector.extract_strided_slice %21 {offsets = [1, 0, 0], sizes = [8, 8, 128], strides = [1, 1, 1]} : vector<10x10x128xbf16> to vector<8x8x128xbf16>
    %37 = vector.shape_cast %36 : vector<8x8x128xbf16> to vector<64x128xbf16>
    %38 = vector.extract_strided_slice %21 {offsets = [1, 1, 0], sizes = [8, 8, 128], strides = [1, 1, 1]} : vector<10x10x128xbf16> to vector<8x8x128xbf16>
    %39 = vector.shape_cast %38 : vector<8x8x128xbf16> to vector<64x128xbf16>
    %40 = vector.extract_strided_slice %21 {offsets = [1, 2, 0], sizes = [8, 8, 128], strides = [1, 1, 1]} : vector<10x10x128xbf16> to vector<8x8x128xbf16>
    %41 = vector.shape_cast %40 : vector<8x8x128xbf16> to vector<64x128xbf16>
    %42 = tpu.concatenate %37, %39, %41 in 1 : vector<64x128xbf16>, vector<64x128xbf16>, vector<64x128xbf16> -> vector<64x384xbf16>
    %c1_32 = arith.constant 1 : index
    %c0_33 = arith.constant 0 : index
    %c0_34 = arith.constant 0 : index
    %43 = vector.load %arg4[%c1_32, %c0_33, %c0_34] : memref<3x384x256xbf16, #tpu.memory_space<vmem>>, vector<1x384x256xbf16>
    %44 = vector.shape_cast %43 : vector<1x384x256xbf16> to vector<384x256xbf16>
    %cst_35 = arith.constant dense<0.000000e+00> : vector<64x256xf32>
    %45 = tpu.matmul %42, %44, %cst_35 {dimension_numbers = #tpu.dot_dimension_numbers<[1], [0], [0], [1], [0, 0, 1, 1], [], []>} : vector<64x384xbf16>, vector<384x256xbf16>, vector<64x256xf32> -> vector<64x256xf32>
    %46 = arith.addf %35, %45 : vector<64x256xf32>
    %47 = vector.extract_strided_slice %21 {offsets = [2, 0, 0], sizes = [8, 8, 128], strides = [1, 1, 1]} : vector<10x10x128xbf16> to vector<8x8x128xbf16>
    %48 = vector.shape_cast %47 : vector<8x8x128xbf16> to vector<64x128xbf16>
    %49 = vector.extract_strided_slice %21 {offsets = [2, 1, 0], sizes = [8, 8, 128], strides = [1, 1, 1]} : vector<10x10x128xbf16> to vector<8x8x128xbf16>
    %50 = vector.shape_cast %49 : vector<8x8x128xbf16> to vector<64x128xbf16>
    %51 = vector.extract_strided_slice %21 {offsets = [2, 2, 0], sizes = [8, 8, 128], strides = [1, 1, 1]} : vector<10x10x128xbf16> to vector<8x8x128xbf16>
    %52 = vector.shape_cast %51 : vector<8x8x128xbf16> to vector<64x128xbf16>
    %53 = tpu.concatenate %48, %50, %52 in 1 : vector<64x128xbf16>, vector<64x128xbf16>, vector<64x128xbf16> -> vector<64x384xbf16>
    %c2 = arith.constant 2 : index
    %c0_36 = arith.constant 0 : index
    %c0_37 = arith.constant 0 : index
    %54 = vector.load %arg4[%c2, %c0_36, %c0_37] : memref<3x384x256xbf16, #tpu.memory_space<vmem>>, vector<1x384x256xbf16>
    %55 = vector.shape_cast %54 : vector<1x384x256xbf16> to vector<384x256xbf16>
    %cst_38 = arith.constant dense<0.000000e+00> : vector<64x256xf32>
    %56 = tpu.matmul %53, %55, %cst_38 {dimension_numbers = #tpu.dot_dimension_numbers<[1], [0], [0], [1], [0, 0, 1, 1], [], []>} : vector<64x384xbf16>, vector<384x256xbf16>, vector<64x256xf32> -> vector<64x256xf32>
    %57 = arith.addf %46, %56 : vector<64x256xf32>
    %cst_39 = arith.constant 1.000000e-01 : f32
    %58 = vector.broadcast %cst_39 : f32 to vector<64x256xf32>
    %59 = arith.mulf %58, %57 : vector<64x256xf32>
    %60 = arith.maximumf %57, %59 : vector<64x256xf32>
    %61 = vector.shape_cast %60 : vector<64x256xf32> to vector<8x8x256xf32>
    %62 = arith.addf %1, %61 : vector<8x8x256xf32>
    %c0_40 = arith.constant 0 : index
    %c0_41 = arith.constant 0 : index
    %c0_42 = arith.constant 0 : index
    %c0_43 = arith.constant 0 : index
    %63 = vector.load %arg6[%c0_40, %c0_41, %c0_42, %c0_43] : memref<1x8x8x256xf32, #tpu.memory_space<vmem>>, vector<1x8x8x256xf32>
    %64 = vector.shape_cast %63 : vector<1x8x8x256xf32> to vector<8x8x256xf32>
    %65 = vector.shape_cast %62 : vector<8x8x256xf32> to vector<1x8x8x256xf32>
    tpu.vector_store %arg6[%c0_40, %c0_41, %c0_42, %c0_43], %65 {strides = array<i32>} : memref<1x8x8x256xf32, #tpu.memory_space<vmem>>, vector<1x8x8x256xf32>,
    return
  }
  func.func @transform_0(%arg0: i32) -> (i32, i32, i32, i32) {
    %c0_i32 = arith.constant 0 : i32
    %c0_i32_0 = arith.constant 0 : i32
    %c0_i32_1 = arith.constant 0 : i32
    %c0_i32_2 = arith.constant 0 : i32
    return %arg0, %c0_i32, %c0_i32_0, %c0_i32_1 : i32, i32, i32, i32
  }
  func.func @transform_1(%arg0: i32) -> (i32, i32) {
    %c0_i32 = arith.constant 0 : i32
    %c0_i32_0 = arith.constant 0 : i32
    %c0_i32_1 = arith.constant 0 : i32
    return %c0_i32, %c0_i32_0 : i32, i32
  }
  func.func @transform_2(%arg0: i32) -> (i32, i32) {
    %c0_i32 = arith.constant 0 : i32
    %c0_i32_0 = arith.constant 0 : i32
    %c0_i32_1 = arith.constant 0 : i32
    return %c0_i32, %c0_i32_0 : i32, i32
  }
  func.func @transform_3(%arg0: i32) -> (i32, i32, i32) {
    %c0_i32 = arith.constant 0 : i32
    %c0_i32_0 = arith.constant 0 : i32
    %c0_i32_1 = arith.constant 0 : i32
    %c0_i32_2 = arith.constant 0 : i32
    return %c0_i32, %c0_i32_0, %c0_i32_1 : i32, i32, i32
  }
  func.func @transform_4(%arg0: i32) -> (i32, i32) {
    %c0_i32 = arith.constant 0 : i32
    %c0_i32_0 = arith.constant 0 : i32
    %c0_i32_1 = arith.constant 0 : i32
    return %c0_i32, %c0_i32_0 : i32, i32
  }
  func.func @transform_5(%arg0: i32) -> (i32, i32, i32, i32) {
    %c0_i32 = arith.constant 0 : i32
    %c0_i32_0 = arith.constant 0 : i32
    %c0_i32_1 = arith.constant 0 : i32
    %c0_i32_2 = arith.constant 0 : i32
    return %arg0, %c0_i32, %c0_i32_0, %c0_i32_1 : i32, i32, i32, i32
  }
}

</mosaic_0001>

<llo_original>
// kernel: resblock3_child_forward.1
$region0: #{resblock3_child_forward.1}
  #allocation0 [shape = 'u32[]', space=smem, size = 0x4, offset = 0x4, fixed_abs, tag = 'smem constant byte address 0x4 - core index']
  #allocation1 [shape = 'u32[144,128]{1,0:T(1,128)}', space=vmem, size = 0x12000, scoped, tag = 'internal scratch']
  #allocation2 [shape = 'f32[10,10,128]{2,1,0:T(8,128)}', space=vmem, size = 0x14000, scoped, tag = 'scratch operand']
  %s0 = inlined_call_operand.vmem [shape: f32[2,8,8,256], index: 0, kind: input, shape index: {}]
  %s1 = inlined_call_operand.vmem [shape: bf16[256,128], index: 1, kind: input, shape index: {}]
  %s2 = inlined_call_operand.vmem [shape: f32[1,128], index: 2, kind: input, shape index: {}]
  %s3 = inlined_call_operand.vmem [shape: bf16[3,384,256], index: 3, kind: input, shape index: {}]
  %s4 = inlined_call_operand.vmem [shape: f32[1,256], index: 4, kind: input, shape index: {}]
  %s5 = inlined_call_operand.hbm [shape: f32[2,8,8,256], index: 5, kind: output, shape index: {}]
  %s6 = sld [smem:[#allocation0]]
  $region53: #{resblock3_child_forward.1} parent=0
    _
  %s8 = ssub.s32 1, %s6
  %s9 = scalar_select 0, %s8, %s6
  $region1: #{resblock3_child_forward.1} parent=0
    #allocation3 [shape = 'u8[131072]{0}', space=vmem, size = 0x20000, scoped, tag = 'output window, operand 0']
    #allocation4 [shape = 's32[2]{0}', space=sflag, size = 0x8, scoped, tag = 'scoped memory for resblock3_child_forward.1']
    %10 = vsyncpa [#allocation4], 0
    %s11 = scalar_lea.sflag [#allocation4], 1
    %12 = vsyncpa %s11, 0
    loop: start=0, step=1, limit=4
    $region2: #{resblock3_child_forward.1} parent=1 // loop_pre_header
      _
    $region3: #{resblock3_child_forward.1} parent=1 // loop_header
      %s14 = sphi 0, %s18
      %p15 = scmp.ge.s32.totalorder %s14, 4
      %s24 = sphi 0, %s26
      %s27 = sphi 0, %s24
      %s28 = sphi 0, %s27
      %s44 = sphi 0, %s28
      %s48 = sphi 0, %s48
      %s50 = sphi 0, %s48
      %s51 = sphi 0, %s50
      %s65 = sphi 0, %s51
      %s69 = sphi 0, %s69
      %s71 = sphi 0, %s69
      %s72 = sphi 0, %s71
      %s86 = sphi 0, %s72
      %s90 = sphi 0, %s90
      %s92 = sphi 0, %s90
      %s93 = sphi 0, %s92
      %s107 = sphi 0, %s93
      %s111 = sphi 0, %s111
      %s113 = sphi 0, %s111
      %s114 = sphi 0, %s113
      %s128 = sphi 0, %s114
      %s134 = sphi 0, %s136
      %s137 = sphi 0, %s134
      %s138 = sphi 0, %s137
      %s154 = sphi 0, %s138
    $region4: #{resblock3_child_forward.1} parent=1 // loop_header_branch
      %17 = sbr.rel (%p15) target = $region8
    $region5: #{resblock3_child_forward.1} parent=1 // loop_body
      %s19 = ssub.s32 %s14, 1
      %s20 = ssub.s32 %s14, 2
      %s21 = sadd.s32 %s14, 1
      %s22 = ssub.s32 %s14, %s21
      %p23 = scmp.eq.s32.totalorder %s22, 0
      %s25 = sadd.s32 %s24, 1
      %s26 = scalar_select %p23, %s24, %s25
      %p29 = pneg %p23
      %p30 = scmp.eq.s32.totalorder %s14, 1
      %p31 = por %p29, %p30
      %p32 = scmp.ne.s32.totalorder %s24, %s27
      %p33 = scmp.eq.s32.totalorder %s14, 0
      %p34 = por %p32, %p33
      %p35 = scmp.ne.s32.totalorder %s24, %s27
      %p36 = scmp.eq.s32.totalorder %s19, 1
      %p37 = por %p35, %p36
      %p38 = scmp.ne.s32.totalorder %s27, %s28
      %p39 = scmp.eq.s32.totalorder %s19, 0
      %p40 = por %p38, %p39
      %p41 = scmp.ne.s32.totalorder %s27, %s28
      %p42 = scmp.eq.s32.totalorder %s20, 1
      %p43 = por %p41, %p42
      %p45 = scmp.ne.s32.totalorder %s28, %s44
      %p46 = scmp.eq.s32.totalorder %s20, 0
      %p47 = por %p45, %p46
      %s49 = sadd.s32 %s48, 1
      %p52 = scmp.eq.s32.totalorder %s14, 1
      %p53 = scmp.ne.s32.totalorder %s48, %s50
      %p54 = scmp.eq.s32.totalorder %s14, 0
      %p55 = por %p53, %p54
      %p56 = scmp.ne.s32.totalorder %s48, %s50
      %p57 = scmp.eq.s32.totalorder %s19, 1
      %p58 = por %p56, %p57
      %p59 = scmp.ne.s32.totalorder %s50, %s51
      %p60 = scmp.eq.s32.totalorder %s19, 0
      %p61 = por %p59, %p60
      %p62 = scmp.ne.s32.totalorder %s50, %s51
      %p63 = scmp.eq.s32.totalorder %s20, 1
      %p64 = por %p62, %p63
      %p66 = scmp.ne.s32.totalorder %s51, %s65
      %p67 = scmp.eq.s32.totalorder %s20, 0
      %p68 = por %p66, %p67
      %s70 = sadd.s32 %s69, 1
      %p73 = scmp.eq.s32.totalorder %s14, 1
      %p74 = scmp.ne.s32.totalorder %s69, %s71
      %p75 = scmp.eq.s32.totalorder %s14, 0
      %p76 = por %p74, %p75
      %p77 = scmp.ne.s32.totalorder %s69, %s71
      %p78 = scmp.eq.s32.totalorder %s19, 1
      %p79 = por %p77, %p78
      %p80 = scmp.ne.s32.totalorder %s71, %s72
      %p81 = scmp.eq.s32.totalorder %s19, 0
      %p82 = por %p80, %p81
      %p83 = scmp.ne.s32.totalorder %s71, %s72
      %p84 = scmp.eq.s32.totalorder %s20, 1
      %p85 = por %p83, %p84
      %p87 = scmp.ne.s32.totalorder %s72, %s86
      %p88 = scmp.eq.s32.totalorder %s20, 0
      %p89 = por %p87, %p88
      %s91 = sadd.s32 %s90, 1
      %p94 = scmp.eq.s32.totalorder %s14, 1
      %p95 = scmp.ne.s32.totalorder %s90, %s92
      %p96 = scmp.eq.s32.totalorder %s14, 0
      %p97 = por %p95, %p96
      %p98 = scmp.ne.s32.totalorder %s90, %s92
      %p99 = scmp.eq.s32.totalorder %s19, 1
      %p100 = por %p98, %p99
      %p101 = scmp.ne.s32.totalorder %s92, %s93
      %p102 = scmp.eq.s32.totalorder %s19, 0
      %p103 = por %p101, %p102
      %p104 = scmp.ne.s32.totalorder %s92, %s93
      %p105 = scmp.eq.s32.totalorder %s20, 1
      %p106 = por %p104, %p105
      %p108 = scmp.ne.s32.totalorder %s93, %s107
      %p109 = scmp.eq.s32.totalorder %s20, 0
      %p110 = por %p108, %p109
      %s112 = sadd.s32 %s111, 1
      %p115 = scmp.eq.s32.totalorder %s14, 1
      %p116 = scmp.ne.s32.totalorder %s111, %s113
      %p117 = scmp.eq.s32.totalorder %s14, 0
      %p118 = por %p116, %p117
      %p119 = scmp.ne.s32.totalorder %s111, %s113
      %p120 = scmp.eq.s32.totalorder %s19, 1
      %p121 = por %p119, %p120
      %p122 = scmp.ne.s32.totalorder %s113, %s114
      %p123 = scmp.eq.s32.totalorder %s19, 0
      %p124 = por %p122, %p123
      %p125 = scmp.ne.s32.totalorder %s113, %s114
      %p126 = scmp.eq.s32.totalorder %s20, 1
      %p127 = por %p125, %p126
      %p129 = scmp.ne.s32.totalorder %s114, %s128
      %p130 = scmp.eq.s32.totalorder %s20, 0
      %p131 = por %p129, %p130
      %s132 = ssub.s32 %s14, %s21
      %p133 = scmp.eq.s32.totalorder %s132, 0
      %s135 = sadd.s32 %s134, 1
      %s136 = scalar_select %p133, %s134, %s135
      %p139 = pneg %p133
      %p140 = scmp.eq.s32.totalorder %s14, 1
      %p141 = por %p139, %p140
      %p142 = scmp.ne.s32.totalorder %s134, %s137
      %p143 = scmp.eq.s32.totalorder %s14, 0
      %p144 = por %p142, %p143
      %p145 = scmp.ne.s32.totalorder %s134, %s137
      %p146 = scmp.eq.s32.totalorder %s19, 1
      %p147 = por %p145, %p146
      %p148 = scmp.ne.s32.totalorder %s137, %s138
      %p149 = scmp.eq.s32.totalorder %s19, 0
      %p150 = por %p148, %p149
      %p151 = scmp.ne.s32.totalorder %s137, %s138
      %p152 = scmp.eq.s32.totalorder %s20, 1
      %p153 = por %p151, %p152
      %p155 = scmp.ne.s32.totalorder %s138, %s154
      %p156 = scmp.eq.s32.totalorder %s20, 0
      %p157 = por %p155, %p156
      %p158 = scmp.le.s32.totalorder 1, %s14
      %p159 = scmp.lt.s32.totalorder %s14, 3
      %p160 = pnand %p158, %p159
      %p161 = pneg %p160
      // Predicated region
      $region9: #{resblock3_child_forward.1} parent=5 // pred_check
        _
      $region10: #{resblock3_child_forward.1} parent=5 // pred_check_branch
        %163 = sbr.rel (%p160) target = $region12
      $region11: #{resblock3_child_forward.1} parent=5 // pred_region
        %s164 = ssub.s32 %s14, 1
        // Predicated region
        $region13: #{resblock3_child_forward.1} parent=11 // pred_check
          %p165 = pneg %p61
        $region14: #{resblock3_child_forward.1} parent=11 // pred_check_branch
          %167 = sbr.rel (%p165) target = $region16
        $region15: #{resblock3_child_forward.1} parent=11 // pred_region
          _
        $region16: #{resblock3_child_forward.1} parent=11 // pred_fallthru
          _
        // Predicated region
        $region17: #{resblock3_child_forward.1} parent=11 // pred_check
          %p168 = pneg %p82
        $region18: #{resblock3_child_forward.1} parent=11 // pred_check_branch
          %170 = sbr.rel (%p168) target = $region20
        $region19: #{resblock3_child_forward.1} parent=11 // pred_region
          _
        $region20: #{resblock3_child_forward.1} parent=11 // pred_fallthru
          _
        // Predicated region
        $region21: #{resblock3_child_forward.1} parent=11 // pred_check
          %p171 = pneg %p103
        $region22: #{resblock3_child_forward.1} parent=11 // pred_check_branch
          %173 = sbr.rel (%p171) target = $region24
        $region23: #{resblock3_child_forward.1} parent=11 // pred_region
          _
        $region24: #{resblock3_child_forward.1} parent=11 // pred_fallthru
          _
        // Predicated region
        $region25: #{resblock3_child_forward.1} parent=11 // pred_check
          %p174 = pneg %p124
        $region26: #{resblock3_child_forward.1} parent=11 // pred_check_branch
          %176 = sbr.rel (%p174) target = $region28
        $region27: #{resblock3_child_forward.1} parent=11 // pred_region
          _
        $region28: #{resblock3_child_forward.1} parent=11 // pred_fallthru
          _
      $region12: #{resblock3_child_forward.1} parent=5 // pred_fallthru
        _
      %p177 = scmp.lt.s32.totalorder %s14, 2
      // Predicated region
      $region29: #{resblock3_child_forward.1} parent=5 // pred_check
        %p178 = pneg %p177
      $region30: #{resblock3_child_forward.1} parent=5 // pred_check_branch
        %180 = sbr.rel (%p178) target = $region32
      $region31: #{resblock3_child_forward.1} parent=5 // pred_region
        // Predicated region
        $region33: #{resblock3_child_forward.1} parent=31 // pred_check
          %p181 = pneg %p34
        $region34: #{resblock3_child_forward.1} parent=31 // pred_check_branch
          %183 = sbr.rel (%p181) target = $region36
        $region35: #{resblock3_child_forward.1} parent=31 // pred_region
          %p184 = scmp.lt.s32.totalorder %s14, 1
          %s185 = scalar_select %p184, %s14, 1
          %s186 = smul.addr %s185, 16
          %s187 = smul.addr %s186, 8
          %s188 = scalar_lea.vmem %s0, %s187
        $region36: #{resblock3_child_forward.1} parent=31 // pred_fallthru
          _
      $region32: #{resblock3_child_forward.1} parent=5 // pred_fallthru
        _
      %p189 = scmp.le.s32.totalorder 1, %s14
      %p190 = scmp.lt.s32.totalorder %s14, 3
      %p191 = pnand %p189, %p190
      %p192 = pneg %p191
      // Predicated region
      $region37: #{resblock3_child_forward.1} parent=5 // pred_check
        _
      $region38: #{resblock3_child_forward.1} parent=5 // pred_check_branch
        %194 = sbr.rel (%p191) target = $region40
      $region39: #{resblock3_child_forward.1} parent=5 // pred_region
        %s195 = ssub.s32 %s14, 1
        %p196 = scmp.lt.s32.totalorder %s19, 1
        %s197 = scalar_select %p196, %s19, 1
        %s198 = smul.addr %s197, 16
        %s199 = smul.addr %s198, 8
        %s200 = scalar_lea.vmem %s0, %s199
        %p201 = pneg %p40
        %p202 = pneg %p37
        %p203 = pneg %p61
        %p204 = pneg %p58
        %p205 = pneg %p82
        %p206 = pneg %p79
        %p207 = pneg %p103
        %p208 = pneg %p100
        %p209 = pneg %p124
        %p210 = pneg %p121
        %p211 = pneg %p150
        %p212 = pneg %p147
        %s213 = sand.u32 %s137, 1
        %s214 = scalar_lea.sflag [#allocation4], %s213
        %s215 = sand.u32 %s137, 1
        %s216 = smul.addr %s215, 128
        %s217 = scalar_lea.vmem [#allocation3], %s216
        %p218 = scmp.lt.s32.totalorder %s19, 1
        %s219 = scalar_select %p218, %s19, 1
        %s220 = smul.addr %s219, 16
        %s221 = smul.addr %s220, 8
        %s222 = scalar_lea.vmem %s0, %s221
        %v224 = vld [vmem:[%s222] sm:$0xff]
        %v225 = vld [vmem:[%s222 + $0x8] sm:$0xff]
        %v226 = vld [vmem:[%s222 + $0x10] sm:$0xff]
        %v227 = vld [vmem:[%s222 + $0x18] sm:$0xff]
        %v228 = vld [vmem:[%s222 + $0x20] sm:$0xff]
        %v229 = vld [vmem:[%s222 + $0x28] sm:$0xff]
        %v230 = vld [vmem:[%s222 + $0x30] sm:$0xff]
        %v231 = vld [vmem:[%s222 + $0x38] sm:$0xff]
        %v232 = vld [vmem:[%s222 + $0x40] sm:$0xff]
        %v233 = vld [vmem:[%s222 + $0x48] sm:$0xff]
        %v234 = vld [vmem:[%s222 + $0x50] sm:$0xff]
        %v235 = vld [vmem:[%s222 + $0x58] sm:$0xff]
        %v236 = vld [vmem:[%s222 + $0x60] sm:$0xff]
        %v237 = vld [vmem:[%s222 + $0x68] sm:$0xff]
        %v238 = vld [vmem:[%s222 + $0x70] sm:$0xff]
        %v239 = vld [vmem:[%s222 + $0x78] sm:$0xff]
        %v240 = vpack.c.bf16 %v226, %v224
        %v241 = vpack.c.bf16 %v227, %v225
        %v242 = vpack.c.bf16 %v230, %v228
        %v243 = vpack.c.bf16 %v231, %v229
        %v244 = vpack.c.bf16 %v234, %v232
        %v245 = vpack.c.bf16 %v235, %v233
        %v246 = vpack.c.bf16 %v238, %v236
        %v247 = vpack.c.bf16 %v239, %v237
        %v248 = vld [vmem:[%s1] sm:$0xf]
        %v249 = vld [vmem:[%s1 + $0x4] sm:$0xf]
        %v250 = vld [vmem:[%s1 + $0x8] sm:$0xf]
        %v251 = vld [vmem:[%s1 + $0xc] sm:$0xf]
        %v252 = vld [vmem:[%s1 + $0x10] sm:$0xf]
        %v253 = vld [vmem:[%s1 + $0x14] sm:$0xf]
        %v254 = vld [vmem:[%s1 + $0x18] sm:$0xf]
        %v255 = vld [vmem:[%s1 + $0x1c] sm:$0xf]
        %v256 = vld [vmem:[%s1 + $0x20] sm:$0xf]
        %v257 = vld [vmem:[%s1 + $0x24] sm:$0xf]
        %v258 = vld [vmem:[%s1 + $0x28] sm:$0xf]
        %v259 = vld [vmem:[%s1 + $0x2c] sm:$0xf]
        %v260 = vld [vmem:[%s1 + $0x30] sm:$0xf]
        %v261 = vld [vmem:[%s1 + $0x34] sm:$0xf]
        %v262 = vld [vmem:[%s1 + $0x38] sm:$0xf]
        %v263 = vld [vmem:[%s1 + $0x3c] sm:$0xf]
        %v264 = vld [vmem:[%s1 + $0x40] sm:$0xf]
        %v265 = vld [vmem:[%s1 + $0x44] sm:$0xf]
        %v266 = vld [vmem:[%s1 + $0x48] sm:$0xf]
        %v267 = vld [vmem:[%s1 + $0x4c] sm:$0xf]
        %v268 = vld [vmem:[%s1 + $0x50] sm:$0xf]
        %v269 = vld [vmem:[%s1 + $0x54] sm:$0xf]
        %v270 = vld [vmem:[%s1 + $0x58] sm:$0xf]
        %v271 = vld [vmem:[%s1 + $0x5c] sm:$0xf]
        %v272 = vld [vmem:[%s1 + $0x60] sm:$0xf]
        %v273 = vld [vmem:[%s1 + $0x64] sm:$0xf]
        %v274 = vld [vmem:[%s1 + $0x68] sm:$0xf]
        %v275 = vld [vmem:[%s1 + $0x6c] sm:$0xf]
        %v276 = vld [vmem:[%s1 + $0x70] sm:$0xf]
        %v277 = vld [vmem:[%s1 + $0x74] sm:$0xf]
        %v278 = vld [vmem:[%s1 + $0x78] sm:$0xf]
        %v279 = vld [vmem:[%s1 + $0x7c] sm:$0xf]
        %v280 = vld [vmem:[%s2] sm:$0x1]
        %v282 = vlaneseq
        %v283 = vshrl.u32 %v282, 7
        %v284 = vsub.s32 0, %v283
        %v285 = vrot.slane %v280, %v284
        %v319 = vunpack.c.l.b16 %v248
        %v320 = vunpack.c.l.b16 %v249
        %v321 = vunpack.c.l.b16 %v250
        %v322 = vunpack.c.l.b16 %v251
        %v323 = vunpack.c.l.b16 %v252
        %v324 = vunpack.c.l.b16 %v253
        %v325 = vunpack.c.l.b16 %v254
        %v326 = vunpack.c.l.b16 %v255
        %v327 = vunpack.c.l.b16 %v256
        %v328 = vunpack.c.l.b16 %v257
        %v329 = vunpack.c.l.b16 %v258
        %v330 = vunpack.c.l.b16 %v259
        %v331 = vunpack.c.l.b16 %v260
        %v332 = vunpack.c.l.b16 %v261
        %v333 = vunpack.c.l.b16 %v262
        %v334 = vunpack.c.l.b16 %v263
        %v335 = vunpack.c.l.b16 %v264
        %v336 = vunpack.c.l.b16 %v265
        %v337 = vunpack.c.l.b16 %v266
        %v338 = vunpack.c.l.b16 %v267
        %v339 = vunpack.c.l.b16 %v268
        %v340 = vunpack.c.l.b16 %v269
        %v341 = vunpack.c.l.b16 %v270
        %v342 = vunpack.c.l.b16 %v271
        %v343 = vunpack.c.l.b16 %v272
        %v344 = vunpack.c.l.b16 %v273
        %v345 = vunpack.c.l.b16 %v274
        %v346 = vunpack.c.l.b16 %v275
        %v347 = vunpack.c.l.b16 %v276
        %v348 = vunpack.c.l.b16 %v277
        %v349 = vunpack.c.l.b16 %v278
        %v350 = vunpack.c.l.b16 %v279
        %v351 = vpack.c.b16 %v320, %v319
        %v352 = vpack.c.b16 %v322, %v321
        %v353 = vpack.c.b16 %v324, %v323
        %v354 = vpack.c.b16 %v326, %v325
        %v355 = vpack.c.b16 %v328, %v327
        %v356 = vpack.c.b16 %v330, %v329
        %v357 = vpack.c.b16 %v332, %v331
        %v358 = vpack.c.b16 %v334, %v333
        %v359 = vpack.c.b16 %v336, %v335
        %v360 = vpack.c.b16 %v338, %v337
        %v361 = vpack.c.b16 %v340, %v339
        %v362 = vpack.c.b16 %v342, %v341
        %v363 = vpack.c.b16 %v344, %v343
        %v364 = vpack.c.b16 %v346, %v345
        %v365 = vpack.c.b16 %v348, %v347
        %v366 = vpack.c.b16 %v350, %v349
        %383 = vmatprep.subr.bf16.mxu0 0
        %384 = vmatpush1.bf16.msra.mxu0 %v351
        %385 = vmatprep.subr.bf16.mxu0 0
        %386 = vmatpush1.bf16.msra.mxu0 %v352
        %387 = vmatprep.subr.bf16.mxu0 0
        %388 = vmatpush1.bf16.msra.mxu0 %v353
        %389 = vmatprep.subr.bf16.mxu0 0
        %390 = vmatpush1.bf16.msra.mxu0 %v354
        %391 = vmatprep.subr.bf16.mxu0 0
        %392 = vmatpush1.bf16.msra.mxu0 %v355
        %393 = vmatprep.subr.bf16.mxu0 0
        %394 = vmatpush1.bf16.msra.mxu0 %v356
        %395 = vmatprep.subr.bf16.mxu0 0
        %396 = vmatpush1.bf16.msra.mxu0 %v357
        %397 = vmatprep.subr.bf16.mxu0 0
        %398 = vmatpush1.bf16.msra.mxu0 %v358
        %399 = vmatprep.subr.bf16.mxu0 0
        %400 = vmatpush1.bf16.msra.mxu0 %v359
        %401 = vmatprep.subr.bf16.mxu0 0
        %402 = vmatpush1.bf16.msra.mxu0 %v360
        %403 = vmatprep.subr.bf16.mxu0 0
        %404 = vmatpush1.bf16.msra.mxu0 %v361
        %405 = vmatprep.subr.bf16.mxu0 0
        %406 = vmatpush1.bf16.msra.mxu0 %v362
        %407 = vmatprep.subr.bf16.mxu0 0
        %408 = vmatpush1.bf16.msra.mxu0 %v363
        %409 = vmatprep.subr.bf16.mxu0 0
        %410 = vmatpush1.bf16.msra.mxu0 %v364
        %411 = vmatprep.subr.bf16.mxu0 0
        %412 = vmatpush1.bf16.msra.mxu0 %v365
        %413 = vmatprep.subr.bf16.mxu0 0
        %414 = vmatpush1.bf16.msra.mxu0 %v366
        %415 = vmatprep.mubr.bf16.mxu0 %v241
        %416 = vmatmul.mubr.bf16.gmra.mrb[0].mxu0 %v240
        %v417 = vpop.f32.mrb[0].mxu0
        %v418 = vadd.f32 %v285, %v417
        %v419 = vpop.f32.mrb[0].mxu0
        %v420 = vpop.f32.mrb[0].mxu0
        %v421 = vadd.f32 %v285, %v420
        %v422 = vpop.f32.mrb[0].mxu0
        %423 = vmatprep.mubr.bf16.mxu0 %v243
        %424 = vmatmul.mubr.bf16.gmra.mrb[0].mxu0 %v242
        %v425 = vpop.f32.mrb[0].mxu0
        %v426 = vadd.f32 %v285, %v425
        %v427 = vpop.f32.mrb[0].mxu0
        %v428 = vpop.f32.mrb[0].mxu0
        %v429 = vadd.f32 %v285, %v428
        %v430 = vpop.f32.mrb[0].mxu0
        %431 = vmatprep.mubr.bf16.mxu0 %v245
        %432 = vmatmul.mubr.bf16.gmra.mrb[0].mxu0 %v244
        %v433 = vpop.f32.mrb[0].mxu0
        %v434 = vadd.f32 %v285, %v433
        %v435 = vpop.f32.mrb[0].mxu0
        %v436 = vpop.f32.mrb[0].mxu0
        %v437 = vadd.f32 %v285, %v436
        %v438 = vpop.f32.mrb[0].mxu0
        %439 = vmatprep.mubr.bf16.mxu0 %v247
        %440 = vmatmul.mubr.bf16.gmra.mrb[0].mxu0 %v246
        %v441 = vpop.f32.mrb[0].mxu0
        %v442 = vadd.f32 %v285, %v441
        %v443 = vpop.f32.mrb[0].mxu0
        %v444 = vpop.f32.mrb[0].mxu0
        %v445 = vadd.f32 %v285, %v444
        %v446 = vpop.f32.mrb[0].mxu0
        %447 = vdwg.mxu0
        %v448 = vmul.f32 %v418, 0.1
        %v449 = vmul.f32 %v421, 0.1
        %v450 = vmul.f32 %v426, 0.1
        %v451 = vmul.f32 %v429, 0.1
        %v452 = vmul.f32 %v434, 0.1
        %v453 = vmul.f32 %v437, 0.1
        %v454 = vmul.f32 %v442, 0.1
        %v455 = vmul.f32 %v445, 0.1
        %v456 = vmax.f32 %v418, %v448
        %v457 = vmax.f32 %v421, %v449
        %v458 = vmax.f32 %v426, %v450
        %v459 = vmax.f32 %v429, %v451
        %v460 = vmax.f32 %v434, %v452
        %v461 = vmax.f32 %v437, %v453
        %v462 = vmax.f32 %v442, %v454
        %v463 = vmax.f32 %v445, %v455
        %464 = vst [vmem:[#allocation2] sm:$0xff] 0.0
        %465 = vst [vmem:[#allocation2 + $0x8] sm:$0x3] 0.0
        %s466 = scalar_lea.vmem [#allocation2], 144
        %467 = vst [vmem:[%s466] sm:$0xff] 0.0
        %468 = vst [vmem:[%s466 + $0x8] sm:$0x3] 0.0
        %469 = vst [vmem:[#allocation2] sm:$0x1] 0.0
        %470 = vst [vmem:[#allocation2 + $0x10] sm:$0x1] 0.0
        %471 = vst [vmem:[#allocation2 + $0x20] sm:$0x1] 0.0
        %472 = vst [vmem:[#allocation2 + $0x30] sm:$0x1] 0.0
        %473 = vst [vmem:[#allocation2 + $0x40] sm:$0x1] 0.0
        %474 = vst [vmem:[#allocation2 + $0x50] sm:$0x1] 0.0
        %475 = vst [vmem:[#allocation2 + $0x60] sm:$0x1] 0.0
        %476 = vst [vmem:[#allocation2 + $0x70] sm:$0x1] 0.0
        %477 = vst [vmem:[#allocation2 + $0x80] sm:$0x1] 0.0
        %478 = vst [vmem:[#allocation2 + $0x90] sm:$0x1] 0.0
        %479 = vst [vmem:[#allocation2 + $0x9] sm:$0x1] 0.0
        %480 = vst [vmem:[#allocation2 + $0x19] sm:$0x1] 0.0
        %481 = vst [vmem:[#allocation2 + $0x29] sm:$0x1] 0.0
        %482 = vst [vmem:[#allocation2 + $0x39] sm:$0x1] 0.0
        %483 = vst [vmem:[#allocation2 + $0x49] sm:$0x1] 0.0
        %484 = vst [vmem:[#allocation2 + $0x59] sm:$0x1] 0.0
        %485 = vst [vmem:[#allocation2 + $0x69] sm:$0x1] 0.0
        %486 = vst [vmem:[#allocation2 + $0x79] sm:$0x1] 0.0
        %487 = vst [vmem:[#allocation2 + $0x89] sm:$0x1] 0.0
        %488 = vst [vmem:[#allocation2 + $0x99] sm:$0x1] 0.0
        %s489 = scalar_lea.vmem [#allocation2], 16
        %490 = vst [vmem:[%s489 + $0x1] sm:$0xff] %v456
        %491 = vst [vmem:[%s489 + $0x11] sm:$0xff] %v457
        %492 = vst [vmem:[%s489 + $0x21] sm:$0xff] %v458
        %493 = vst [vmem:[%s489 + $0x31] sm:$0xff] %v459
        %494 = vst [vmem:[%s489 + $0x41] sm:$0xff] %v460
        %495 = vst [vmem:[%s489 + $0x51] sm:$0xff] %v461
        %496 = vst [vmem:[%s489 + $0x61] sm:$0xff] %v462
        %497 = vst [vmem:[%s489 + $0x71] sm:$0xff] %v463
        %v498 = vld [vmem:[#allocation2] sm:$0xff]
        %v499 = vld [vmem:[#allocation2 + $0x8] sm:$0x3]
        %v500 = vld [vmem:[#allocation2 + $0x10] sm:$0xff]
        %v501 = vld [vmem:[#allocation2 + $0x18] sm:$0x3]
        %v502 = vld [vmem:[#allocation2 + $0x20] sm:$0xff]
        %v503 = vld [vmem:[#allocation2 + $0x28] sm:$0x3]
        %v504 = vld [vmem:[#allocation2 + $0x30] sm:$0xff]
        %v505 = vld [vmem:[#allocation2 + $0x38] sm:$0x3]
        %v506 = vld [vmem:[#allocation2 + $0x40] sm:$0xff]
        %v507 = vld [vmem:[#allocation2 + $0x48] sm:$0x3]
        %v508 = vld [vmem:[#allocation2 + $0x50] sm:$0xff]
        %v509 = vld [vmem:[#allocation2 + $0x58] sm:$0x3]
        %v510 = vld [vmem:[#allocation2 + $0x60] sm:$0xff]
        %v511 = vld [vmem:[#allocation2 + $0x68] sm:$0x3]
        %v512 = vld [vmem:[#allocation2 + $0x70] sm:$0xff]
        %v513 = vld [vmem:[#allocation2 + $0x78] sm:$0x3]
        %v514 = vld [vmem:[#allocation2 + $0x80] sm:$0xff]
        %v515 = vld [vmem:[#allocation2 + $0x88] sm:$0x3]
        %v516 = vld [vmem:[#allocation2 + $0x90] sm:$0xff]
        %v517 = vld [vmem:[#allocation2 + $0x98] sm:$0x3]
        %v518 = vpack.c.bf16 %v499, %v498
        %v519 = vpack.c.bf16 %v501, %v500
        %v520 = vpack.c.bf16 %v503, %v502
        %v521 = vpack.c.bf16 %v505, %v504
        %v522 = vpack.c.bf16 %v507, %v506
        %v523 = vpack.c.bf16 %v509, %v508
        %v524 = vpack.c.bf16 %v511, %v510
        %v525 = vpack.c.bf16 %v513, %v512
        %v526 = vpack.c.bf16 %v515, %v514
        %v527 = vpack.c.bf16 %v517, %v516
        %v528 = vld [vmem:[%s4] sm:$0x3]
        %v530 = vlaneseq
        %v531 = vshrl.u32 %v530, 7
        %v532 = vsub.s32 0, %v531
        %v533 = vrot.slane %v528, %v532
        %v534 = vlaneseq
        %v535 = vshrl.u32 %v534, 7
        %v536 = vsub.s32 1, %v535
        %v537 = vrot.slane %v528, %v536
        %v548 = vunpack.c.l.b16 %v518
        %v549 = vunpack.c.h.b16 %v518
        %v550 = vunpack.c.l.b16 %v519
        %v551 = vunpack.c.h.b16 %v519
        %v552 = vunpack.c.l.b16 %v520
        %v553 = vunpack.c.h.b16 %v520
        %v554 = vunpack.c.l.b16 %v521
        %v555 = vunpack.c.h.b16 %v521
        %v556 = vunpack.c.l.b16 %v522
        %v557 = vunpack.c.h.b16 %v522
        %v558 = vunpack.c.l.b16 %v523
        %v559 = vunpack.c.h.b16 %v523
        %v560 = vunpack.c.l.b16 %v524
        %v561 = vunpack.c.h.b16 %v524
        %v562 = vunpack.c.l.b16 %v525
        %v563 = vunpack.c.h.b16 %v525
        %v564 = vpack.c.b16 %v548, %v548
        %v565 = vpack.c.b16 %v549, %v549
        %v566 = vpack.c.b16 %v550, %v550
        %v567 = vpack.c.b16 %v551, %v551
        %v568 = vpack.c.b16 %v552, %v552
        %v569 = vpack.c.b16 %v553, %v553
        %v570 = vpack.c.b16 %v554, %v554
        %v571 = vpack.c.b16 %v555, %v555
        %v572 = vpack.c.b16 %v556, %v556
        %v573 = vpack.c.b16 %v557, %v557
        %v574 = vpack.c.b16 %v558, %v558
        %v575 = vpack.c.b16 %v559, %v559
        %v576 = vpack.c.b16 %v560, %v560
        %v577 = vpack.c.b16 %v561, %v561
        %v578 = vpack.c.b16 %v562, %v562
        %v579 = vpack.c.b16 %v563, %v563
        %vm580 = vsmask.f32 3328
        %vm581 = vsmask.f32 7440
        %vm582 = vmor %vm580, %vm581
        %v584 = vshrl.u32 %v564, 16
        %v586 = vrot.slane %v584, 4
        %v587 = vshll.u32 %v564, 16
        %v589 = vrot.slane %v587, 5
        %v590 = vor.u32 %v586, %v589
        %v591 = vrot.slane %v590, 4
        %v593 = vshll.u32 %v565, 16
        %v595 = vrot.slane %v593, 5
        %v596 = vsel %vm582, %v591, %v595
        %v598 = vshrl.u32 %v566, 16
        %v600 = vrot.slane %v598, 4
        %v601 = vshll.u32 %v566, 16
        %v603 = vrot.slane %v601, 5
        %v604 = vor.u32 %v600, %v603
        %v605 = vrot.slane %v604, 4
        %v607 = vshll.u32 %v567, 16
        %v609 = vrot.slane %v607, 5
        %v610 = vsel %vm582, %v605, %v609
        %v612 = vshrl.u32 %v568, 16
        %v614 = vrot.slane %v612, 4
        %v615 = vshll.u32 %v568, 16
        %v617 = vrot.slane %v615, 5
        %v618 = vor.u32 %v614, %v617
        %v619 = vrot.slane %v618, 4
        %v621 = vshll.u32 %v569, 16
        %v623 = vrot.slane %v621, 5
        %v624 = vsel %vm582, %v619, %v623
        %v626 = vshrl.u32 %v570, 16
        %v628 = vrot.slane %v626, 4
        %v629 = vshll.u32 %v570, 16
        %v631 = vrot.slane %v629, 5
        %v632 = vor.u32 %v628, %v631
        %v633 = vrot.slane %v632, 4
        %v635 = vshll.u32 %v571, 16
        %v637 = vrot.slane %v635, 5
        %v638 = vsel %vm582, %v633, %v637
        %v640 = vshrl.u32 %v572, 16
        %v642 = vrot.slane %v640, 4
        %v643 = vshll.u32 %v572, 16
        %v645 = vrot.slane %v643, 5
        %v646 = vor.u32 %v642, %v645
        %v647 = vrot.slane %v646, 4
        %v649 = vshll.u32 %v573, 16
        %v651 = vrot.slane %v649, 5
        %v652 = vsel %vm582, %v647, %v651
        %v654 = vshrl.u32 %v574, 16
        %v656 = vrot.slane %v654, 4
        %v657 = vshll.u32 %v574, 16
        %v659 = vrot.slane %v657, 5
        %v660 = vor.u32 %v656, %v659
        %v661 = vrot.slane %v660, 4
        %v663 = vshll.u32 %v575, 16
        %v665 = vrot.slane %v663, 5
        %v666 = vsel %vm582, %v661, %v665
        %v668 = vshrl.u32 %v576, 16
        %v670 = vrot.slane %v668, 4
        %v671 = vshll.u32 %v576, 16
        %v673 = vrot.slane %v671, 5
        %v674 = vor.u32 %v670, %v673
        %v675 = vrot.slane %v674, 4
        %v677 = vshll.u32 %v577, 16
        %v679 = vrot.slane %v677, 5
        %v680 = vsel %vm582, %v675, %v679
        %v682 = vshrl.u32 %v578, 16
        %v684 = vrot.slane %v682, 4
        %v685 = vshll.u32 %v578, 16
        %v687 = vrot.slane %v685, 5
        %v688 = vor.u32 %v684, %v687
        %v689 = vrot.slane %v688, 4
        %v691 = vshll.u32 %v579, 16
        %v693 = vrot.slane %v691, 5
        %v694 = vsel %vm582, %v689, %v693
        %vm695 = vcmask 1042432
        %vm696 = vcmask 1046532
        %vm697 = vmor %vm695, %vm696
        %v698 = vrot.slane %v564, 5
        %v699 = vrot.slane %v698, 4
        %v700 = vrot.slane %v565, 5
        %v701 = vsel %vm697, %v699, %v700
        %v702 = vrot.slane %v566, 5
        %v703 = vrot.slane %v702, 4
        %v704 = vrot.slane %v567, 5
        %v705 = vsel %vm697, %v703, %v704
        %v706 = vrot.slane %v568, 5
        %v707 = vrot.slane %v706, 4
        %v708 = vrot.slane %v569, 5
        %v709 = vsel %vm697, %v707, %v708
        %v710 = vrot.slane %v570, 5
        %v711 = vrot.slane %v710, 4
        %v712 = vrot.slane %v571, 5
        %v713 = vsel %vm697, %v711, %v712
        %v714 = vrot.slane %v572, 5
        %v715 = vrot.slane %v714, 4
        %v716 = vrot.slane %v573, 5
        %v717 = vsel %vm697, %v715, %v716
        %v718 = vrot.slane %v574, 5
        %v719 = vrot.slane %v718, 4
        %v720 = vrot.slane %v575, 5
        %v721 = vsel %vm697, %v719, %v720
        %v722 = vrot.slane %v576, 5
        %v723 = vrot.slane %v722, 4
        %v724 = vrot.slane %v577, 5
        %v725 = vsel %vm697, %v723, %v724
        %v726 = vrot.slane %v578, 5
        %v727 = vrot.slane %v726, 4
        %v728 = vrot.slane %v579, 5
        %v729 = vsel %vm697, %v727, %v728
        %v730 = vpack.c.b16 %v550, %v548
        %v731 = vpack.c.b16 %v554, %v552
        %v732 = vpack.c.b16 %v558, %v556
        %v733 = vpack.c.b16 %v562, %v560
        %v738 = vunpack.c.l.b16 %v596
        %v739 = vunpack.c.l.b16 %v610
        %v740 = vunpack.c.l.b16 %v624
        %v741 = vunpack.c.l.b16 %v638
        %v742 = vunpack.c.l.b16 %v652
        %v743 = vunpack.c.l.b16 %v666
        %v744 = vunpack.c.l.b16 %v680
        %v745 = vunpack.c.l.b16 %v694
        %v746 = vpack.c.b16 %v739, %v738
        %v747 = vpack.c.b16 %v741, %v740
        %v748 = vpack.c.b16 %v743, %v742
        %v749 = vpack.c.b16 %v745, %v744
        %v754 = vunpack.c.l.b16 %v701
        %v755 = vunpack.c.l.b16 %v705
        %v756 = vunpack.c.l.b16 %v709
        %v757 = vunpack.c.l.b16 %v713
        %v758 = vunpack.c.l.b16 %v717
        %v759 = vunpack.c.l.b16 %v721
        %v760 = vunpack.c.l.b16 %v725
        %v761 = vunpack.c.l.b16 %v729
        %v762 = vpack.c.b16 %v755, %v754
        %v763 = vpack.c.b16 %v757, %v756
        %v764 = vpack.c.b16 %v759, %v758
        %v765 = vpack.c.b16 %v761, %v760
        %v770 = vld [vmem:[%s3] sm:$0xff]
        %v771 = vld [vmem:[%s3 + $0x8] sm:$0xff]
        %v772 = vld [vmem:[%s3 + $0x10] sm:$0xff]
        %v773 = vld [vmem:[%s3 + $0x18] sm:$0xff]
        %v774 = vld [vmem:[%s3 + $0x20] sm:$0xff]
        %v775 = vld [vmem:[%s3 + $0x28] sm:$0xff]
        %v776 = vld [vmem:[%s3 + $0x30] sm:$0xff]
        %v777 = vld [vmem:[%s3 + $0x38] sm:$0xff]
        %v778 = vld [vmem:[%s3 + $0x40] sm:$0xff]
        %v779 = vld [vmem:[%s3 + $0x48] sm:$0xff]
        %v780 = vld [vmem:[%s3 + $0x50] sm:$0xff]
        %v781 = vld [vmem:[%s3 + $0x58] sm:$0xff]
        %v782 = vld [vmem:[%s3 + $0x60] sm:$0xff]
        %v783 = vld [vmem:[%s3 + $0x68] sm:$0xff]
        %v784 = vld [vmem:[%s3 + $0x70] sm:$0xff]
        %v785 = vld [vmem:[%s3 + $0x78] sm:$0xff]
        %v786 = vld [vmem:[%s3 + $0x80] sm:$0xff]
        %v787 = vld [vmem:[%s3 + $0x88] sm:$0xff]
        %v788 = vld [vmem:[%s3 + $0x90] sm:$0xff]
        %v789 = vld [vmem:[%s3 + $0x98] sm:$0xff]
        %v790 = vld [vmem:[%s3 + $0xa0] sm:$0xff]
        %v791 = vld [vmem:[%s3 + $0xa8] sm:$0xff]
        %v792 = vld [vmem:[%s3 + $0xb0] sm:$0xff]
        %v793 = vld [vmem:[%s3 + $0xb8] sm:$0xff]
        %v794 = vld [vmem:[%s3 + $0xc0] sm:$0xff]
        %v795 = vld [vmem:[%s3 + $0xc8] sm:$0xff]
        %v796 = vld [vmem:[%s3 + $0xd0] sm:$0xff]
        %v797 = vld [vmem:[%s3 + $0xd8] sm:$0xff]
        %v798 = vld [vmem:[%s3 + $0xe0] sm:$0xff]
        %v799 = vld [vmem:[%s3 + $0xe8] sm:$0xff]
        %v800 = vld [vmem:[%s3 + $0xf0] sm:$0xff]
        %v801 = vld [vmem:[%s3 + $0xf8] sm:$0xff]
        %v802 = vld [vmem:[%s3 + $0x100] sm:$0xff]
        %v803 = vld [vmem:[%s3 + $0x108] sm:$0xff]
        %v804 = vld [vmem:[%s3 + $0x110] sm:$0xff]
        %v805 = vld [vmem:[%s3 + $0x118] sm:$0xff]
        %v806 = vld [vmem:[%s3 + $0x120] sm:$0xff]
        %v807 = vld [vmem:[%s3 + $0x128] sm:$0xff]
        %v808 = vld [vmem:[%s3 + $0x130] sm:$0xff]
        %v809 = vld [vmem:[%s3 + $0x138] sm:$0xff]
        %v810 = vld [vmem:[%s3 + $0x140] sm:$0xff]
        %v811 = vld [vmem:[%s3 + $0x148] sm:$0xff]
        %v812 = vld [vmem:[%s3 + $0x150] sm:$0xff]
        %v813 = vld [vmem:[%s3 + $0x158] sm:$0xff]
        %v814 = vld [vmem:[%s3 + $0x160] sm:$0xff]
        %v815 = vld [vmem:[%s3 + $0x168] sm:$0xff]
        %v816 = vld [vmem:[%s3 + $0x170] sm:$0xff]
        %v817 = vld [vmem:[%s3 + $0x178] sm:$0xff]
        %v866 = vunpack.c.l.b16 %v770
        %v867 = vunpack.c.h.b16 %v770
        %v868 = vunpack.c.l.b16 %v771
        %v869 = vunpack.c.h.b16 %v771
        %v870 = vunpack.c.l.b16 %v772
        %v871 = vunpack.c.h.b16 %v772
        %v872 = vunpack.c.l.b16 %v773
        %v873 = vunpack.c.h.b16 %v773
        %v874 = vunpack.c.l.b16 %v774
        %v875 = vunpack.c.h.b16 %v774
        %v876 = vunpack.c.l.b16 %v775
        %v877 = vunpack.c.h.b16 %v775
        %v878 = vunpack.c.l.b16 %v776
        %v879 = vunpack.c.h.b16 %v776
        %v880 = vunpack.c.l.b16 %v777
        %v881 = vunpack.c.h.b16 %v777
        %v882 = vunpack.c.l.b16 %v778
        %v883 = vunpack.c.h.b16 %v778
        %v884 = vunpack.c.l.b16 %v779
        %v885 = vunpack.c.h.b16 %v779
        %v886 = vunpack.c.l.b16 %v780
        %v887 = vunpack.c.h.b16 %v780
        %v888 = vunpack.c.l.b16 %v781
        %v889 = vunpack.c.h.b16 %v781
        %v890 = vunpack.c.l.b16 %v782
        %v891 = vunpack.c.h.b16 %v782
        %v892 = vunpack.c.l.b16 %v783
        %v893 = vunpack.c.h.b16 %v783
        %v894 = vunpack.c.l.b16 %v784
        %v895 = vunpack.c.h.b16 %v784
        %v896 = vunpack.c.l.b16 %v785
        %v897 = vunpack.c.h.b16 %v785
        %v898 = vunpack.c.l.b16 %v786
        %v899 = vunpack.c.h.b16 %v786
        %v900 = vunpack.c.l.b16 %v787
        %v901 = vunpack.c.h.b16 %v787
        %v902 = vunpack.c.l.b16 %v788
        %v903 = vunpack.c.h.b16 %v788
        %v904 = vunpack.c.l.b16 %v789
        %v905 = vunpack.c.h.b16 %v789
        %v906 = vunpack.c.l.b16 %v790
        %v907 = vunpack.c.h.b16 %v790
        %v908 = vunpack.c.l.b16 %v791
        %v909 = vunpack.c.h.b16 %v791
        %v910 = vunpack.c.l.b16 %v792
        %v911 = vunpack.c.h.b16 %v792
        %v912 = vunpack.c.l.b16 %v793
        %v913 = vunpack.c.h.b16 %v793
        %v914 = vunpack.c.l.b16 %v794
        %v915 = vunpack.c.h.b16 %v794
        %v916 = vunpack.c.l.b16 %v795
        %v917 = vunpack.c.h.b16 %v795
        %v918 = vunpack.c.l.b16 %v796
        %v919 = vunpack.c.h.b16 %v796
        %v920 = vunpack.c.l.b16 %v797
        %v921 = vunpack.c.h.b16 %v797
        %v922 = vunpack.c.l.b16 %v798
        %v923 = vunpack.c.h.b16 %v798
        %v924 = vunpack.c.l.b16 %v799
        %v925 = vunpack.c.h.b16 %v799
        %v926 = vunpack.c.l.b16 %v800
        %v927 = vunpack.c.h.b16 %v800
        %v928 = vunpack.c.l.b16 %v801
        %v929 = vunpack.c.h.b16 %v801
        %v930 = vunpack.c.l.b16 %v802
        %v931 = vunpack.c.h.b16 %v802
        %v932 = vunpack.c.l.b16 %v803
        %v933 = vunpack.c.h.b16 %v803
        %v934 = vunpack.c.l.b16 %v804
        %v935 = vunpack.c.h.b16 %v804
        %v936 = vunpack.c.l.b16 %v805
        %v937 = vunpack.c.h.b16 %v805
        %v938 = vunpack.c.l.b16 %v806
        %v939 = vunpack.c.h.b16 %v806
        %v940 = vunpack.c.l.b16 %v807
        %v941 = vunpack.c.h.b16 %v807
        %v942 = vunpack.c.l.b16 %v808
        %v943 = vunpack.c.h.b16 %v808
        %v944 = vunpack.c.l.b16 %v809
        %v945 = vunpack.c.h.b16 %v809
        %v946 = vunpack.c.l.b16 %v810
        %v947 = vunpack.c.h.b16 %v810
        %v948 = vunpack.c.l.b16 %v811
        %v949 = vunpack.c.h.b16 %v811
        %v950 = vunpack.c.l.b16 %v812
        %v951 = vunpack.c.h.b16 %v812
        %v952 = vunpack.c.l.b16 %v813
        %v953 = vunpack.c.h.b16 %v813
        %v954 = vunpack.c.l.b16 %v814
        %v955 = vunpack.c.h.b16 %v814
        %v956 = vunpack.c.l.b16 %v815
        %v957 = vunpack.c.h.b16 %v815
        %v958 = vunpack.c.l.b16 %v816
        %v959 = vunpack.c.h.b16 %v816
        %v960 = vunpack.c.l.b16 %v817
        %v961 = vunpack.c.h.b16 %v817
        %v962 = vpack.c.b16 %v868, %v866
        %v963 = vpack.c.b16 %v869, %v867
        %v964 = vpack.c.b16 %v872, %v870
        %v965 = vpack.c.b16 %v873, %v871
        %v966 = vpack.c.b16 %v876, %v874
        %v967 = vpack.c.b16 %v877, %v875
        %v968 = vpack.c.b16 %v880, %v878
        %v969 = vpack.c.b16 %v881, %v879
        %v970 = vpack.c.b16 %v884, %v882
        %v971 = vpack.c.b16 %v885, %v883
        %v972 = vpack.c.b16 %v888, %v886
        %v973 = vpack.c.b16 %v889, %v887
        %v974 = vpack.c.b16 %v892, %v890
        %v975 = vpack.c.b16 %v893, %v891
        %v976 = vpack.c.b16 %v896, %v894
        %v977 = vpack.c.b16 %v897, %v895
        %v978 = vpack.c.b16 %v900, %v898
        %v979 = vpack.c.b16 %v901, %v899
        %v980 = vpack.c.b16 %v904, %v902
        %v981 = vpack.c.b16 %v905, %v903
        %v982 = vpack.c.b16 %v908, %v906
        %v983 = vpack.c.b16 %v909, %v907
        %v984 = vpack.c.b16 %v912, %v910
        %v985 = vpack.c.b16 %v913, %v911
        %v986 = vpack.c.b16 %v916, %v914
        %v987 = vpack.c.b16 %v917, %v915
        %v988 = vpack.c.b16 %v920, %v918
        %v989 = vpack.c.b16 %v921, %v919
        %v990 = vpack.c.b16 %v924, %v922
        %v991 = vpack.c.b16 %v925, %v923
        %v992 = vpack.c.b16 %v928, %v926
        %v993 = vpack.c.b16 %v929, %v927
        %v994 = vpack.c.b16 %v932, %v930
        %v995 = vpack.c.b16 %v933, %v931
        %v996 = vpack.c.b16 %v936, %v934
        %v997 = vpack.c.b16 %v937, %v935
        %v998 = vpack.c.b16 %v940, %v938
        %v999 = vpack.c.b16 %v941, %v939
        %v1000 = vpack.c.b16 %v944, %v942
        %v1001 = vpack.c.b16 %v945, %v943
        %v1002 = vpack.c.b16 %v948, %v946
        %v1003 = vpack.c.b16 %v949, %v947
        %v1004 = vpack.c.b16 %v952, %v950
        %v1005 = vpack.c.b16 %v953, %v951
        %v1006 = vpack.c.b16 %v956, %v954
        %v1007 = vpack.c.b16 %v957, %v955
        %v1008 = vpack.c.b16 %v960, %v958
        %v1009 = vpack.c.b16 %v961, %v959
        %1058 = vmatprep.subr.bf16.mxu0 %v963
        %1059 = vmatpush1.bf16.msra.mxu0 %v962
        %1060 = vmatprep.subr.bf16.mxu0 %v965
        %1061 = vmatpush1.bf16.msra.mxu0 %v964
        %1062 = vmatprep.subr.bf16.mxu0 %v967
        %1063 = vmatpush1.bf16.msra.mxu0 %v966
        %1064 = vmatprep.subr.bf16.mxu0 %v969
        %1065 = vmatpush1.bf16.msra.mxu0 %v968
        %1066 = vmatprep.subr.bf16.mxu0 %v971
        %1067 = vmatpush1.bf16.msra.mxu0 %v970
        %1068 = vmatprep.subr.bf16.mxu0 %v973
        %1069 = vmatpush1.bf16.msra.mxu0 %v972
        %1070 = vmatprep.subr.bf16.mxu0 %v975
        %1071 = vmatpush1.bf16.msra.mxu0 %v974
        %1072 = vmatprep.subr.bf16.mxu0 %v977
        %1073 = vmatpush1.bf16.msra.mxu0 %v976
        %1074 = vmatprep.subr.bf16.mxu0 %v979
        %1075 = vmatpush1.bf16.msra.mxu0 %v978
        %1076 = vmatprep.subr.bf16.mxu0 %v981
        %1077 = vmatpush1.bf16.msra.mxu0 %v980
        %1078 = vmatprep.subr.bf16.mxu0 %v983
        %1079 = vmatpush1.bf16.msra.mxu0 %v982
        %1080 = vmatprep.subr.bf16.mxu0 %v985
        %1081 = vmatpush1.bf16.msra.mxu0 %v984
        %1082 = vmatprep.subr.bf16.mxu0 %v987
        %1083 = vmatpush1.bf16.msra.mxu0 %v986
        %1084 = vmatprep.subr.bf16.mxu0 %v989
        %1085 = vmatpush1.bf16.msra.mxu0 %v988
        %1086 = vmatprep.subr.bf16.mxu0 %v991
        %1087 = vmatpush1.bf16.msra.mxu0 %v990
        %1088 = vmatprep.subr.bf16.mxu0 %v993
        %1089 = vmatpush1.bf16.msra.mxu0 %v992
        %1090 = vmatprep.mubr.bf16.mxu0 %v746
        %1091 = vmatmul.mubr.bf16.gmra.mrb[0].mxu0 %v730
        %v1092 = vpop.f32.mrb[0].mxu0
        %v1093 = vadd.f32 0.0, %v1092
        %v1094 = vpop.f32.mrb[0].mxu0
        %v1095 = vadd.f32 0.0, %v1094
        %v1096 = vpop.f32.mrb[0].mxu0
        %v1097 = vadd.f32 0.0, %v1096
        %v1098 = vpop.f32.mrb[0].mxu0
        %v1099 = vadd.f32 0.0, %v1098
        %1100 = vmatprep.mubr.bf16.mxu0 %v747
        %1101 = vmatmul.mubr.bf16.gmra.mrb[0].mxu0 %v731
        %v1102 = vpop.f32.mrb[0].mxu0
        %v1103 = vadd.f32 0.0, %v1102
        %v1104 = vpop.f32.mrb[0].mxu0
        %v1105 = vadd.f32 0.0, %v1104
        %v1106 = vpop.f32.mrb[0].mxu0
        %v1107 = vadd.f32 0.0, %v1106
        %v1108 = vpop.f32.mrb[0].mxu0
        %v1109 = vadd.f32 0.0, %v1108
        %1110 = vmatprep.mubr.bf16.mxu0 %v748
        %1111 = vmatmul.mubr.bf16.gmra.mrb[0].mxu0 %v732
        %v1112 = vpop.f32.mrb[0].mxu0
        %v1113 = vadd.f32 0.0, %v1112
        %v1114 = vpop.f32.mrb[0].mxu0
        %v1115 = vadd.f32 0.0, %v1114
        %v1116 = vpop.f32.mrb[0].mxu0
        %v1117 = vadd.f32 0.0, %v1116
        %v1118 = vpop.f32.mrb[0].mxu0
        %v1119 = vadd.f32 0.0, %v1118
        %1120 = vmatprep.mubr.bf16.mxu0 %v749
        %1121 = vmatmul.mubr.bf16.gmra.mrb[0].mxu0 %v733
        %v1122 = vpop.f32.mrb[0].mxu0
        %v1123 = vadd.f32 0.0, %v1122
        %v1124 = vpop.f32.mrb[0].mxu0
        %v1125 = vadd.f32 0.0, %v1124
        %v1126 = vpop.f32.mrb[0].mxu0
        %v1127 = vadd.f32 0.0, %v1126
        %v1128 = vpop.f32.mrb[0].mxu0
        %v1129 = vadd.f32 0.0, %v1128
        %1130 = vdwg.mxu0
        %1131 = vmatprep.subr.bf16.mxu0 %v995
        %1132 = vmatpush1.bf16.msra.mxu0 %v994
        %1133 = vmatprep.subr.bf16.mxu0 %v997
        %1134 = vmatpush1.bf16.msra.mxu0 %v996
        %1135 = vmatprep.subr.bf16.mxu0 %v999
        %1136 = vmatpush1.bf16.msra.mxu0 %v998
        %1137 = vmatprep.subr.bf16.mxu0 %v1001
        %1138 = vmatpush1.bf16.msra.mxu0 %v1000
        %1139 = vmatprep.subr.bf16.mxu0 %v1003
        %1140 = vmatpush1.bf16.msra.mxu0 %v1002
        %1141 = vmatprep.subr.bf16.mxu0 %v1005
        %1142 = vmatpush1.bf16.msra.mxu0 %v1004
        %1143 = vmatprep.subr.bf16.mxu0 %v1007
        %1144 = vmatpush1.bf16.msra.mxu0 %v1006
        %1145 = vmatprep.subr.bf16.mxu0 %v1009
        %1146 = vmatpush1.bf16.msra.mxu0 %v1008
        %1147 = vmatprep.subr.bf16.mxu0 0
        %1148 = vmatpush1.bf16.msra.mxu0 0
        %1149 = vmatprep.subr.bf16.mxu0 0
        %1150 = vmatpush1.bf16.msra.mxu0 0
        %1151 = vmatprep.subr.bf16.mxu0 0
        %1152 = vmatpush1.bf16.msra.mxu0 0
        %1153 = vmatprep.subr.bf16.mxu0 0
        %1154 = vmatpush1.bf16.msra.mxu0 0
        %1155 = vmatprep.subr.bf16.mxu0 0
        %1156 = vmatpush1.bf16.msra.mxu0 0
        %1157 = vmatprep.subr.bf16.mxu0 0
        %1158 = vmatpush1.bf16.msra.mxu0 0
        %1159 = vmatprep.subr.bf16.mxu0 0
        %1160 = vmatpush1.bf16.msra.mxu0 0
        %1161 = vmatprep.subr.bf16.mxu0 0
        %1162 = vmatpush1.bf16.msra.mxu0 0
        %1163 = vmatprep.mubr.bf16.mxu0 0
        %1164 = vmatmul.mubr.bf16.gmra.mrb[0].mxu0 %v762
        %v1165 = vpop.f32.mrb[0].mxu0
        %v1166 = vadd.f32 %v1093, %v1165
        %v1167 = vpop.f32.mrb[0].mxu0
        %v1168 = vadd.f32 %v1095, %v1167
        %v1169 = vpop.f32.mrb[0].mxu0
        %v1170 = vadd.f32 %v1097, %v1169
        %v1171 = vpop.f32.mrb[0].mxu0
        %v1172 = vadd.f32 %v1099, %v1171
        %1173 = vmatprep.mubr.bf16.mxu0 0
        %1174 = vmatmul.mubr.bf16.gmra.mrb[0].mxu0 %v763
        %v1175 = vpop.f32.mrb[0].mxu0
        %v1176 = vadd.f32 %v1103, %v1175
        %v1177 = vpop.f32.mrb[0].mxu0
        %v1178 = vadd.f32 %v1105, %v1177
        %v1179 = vpop.f32.mrb[0].mxu0
        %v1180 = vadd.f32 %v1107, %v1179
        %v1181 = vpop.f32.mrb[0].mxu0
        %v1182 = vadd.f32 %v1109, %v1181
        %1183 = vmatprep.mubr.bf16.mxu0 0
        %1184 = vmatmul.mubr.bf16.gmra.mrb[0].mxu0 %v764
        %v1185 = vpop.f32.mrb[0].mxu0
        %v1186 = vadd.f32 %v1113, %v1185
        %v1187 = vpop.f32.mrb[0].mxu0
        %v1188 = vadd.f32 %v1115, %v1187
        %v1189 = vpop.f32.mrb[0].mxu0
        %v1190 = vadd.f32 %v1117, %v1189
        %v1191 = vpop.f32.mrb[0].mxu0
        %v1192 = vadd.f32 %v1119, %v1191
        %1193 = vmatprep.mubr.bf16.mxu0 0
        %1194 = vmatmul.mubr.bf16.gmra.mrb[0].mxu0 %v765
        %v1195 = vpop.f32.mrb[0].mxu0
        %v1196 = vadd.f32 %v1123, %v1195
        %v1197 = vpop.f32.mrb[0].mxu0
        %v1198 = vadd.f32 %v1125, %v1197
        %v1199 = vpop.f32.mrb[0].mxu0
        %v1200 = vadd.f32 %v1127, %v1199
        %v1201 = vpop.f32.mrb[0].mxu0
        %v1202 = vadd.f32 %v1129, %v1201
        %1203 = vdwg.mxu0
        %v1204 = vadd.f32 %v533, %v1166
        %v1205 = vadd.f32 %v537, %v1168
        %v1206 = vadd.f32 %v533, %v1170
        %v1207 = vadd.f32 %v537, %v1172
        %v1208 = vadd.f32 %v533, %v1176
        %v1209 = vadd.f32 %v537, %v1178
        %v1210 = vadd.f32 %v533, %v1180
        %v1211 = vadd.f32 %v537, %v1182
        %v1212 = vadd.f32 %v533, %v1186
        %v1213 = vadd.f32 %v537, %v1188
        %v1214 = vadd.f32 %v533, %v1190
        %v1215 = vadd.f32 %v537, %v1192
        %v1216 = vadd.f32 %v533, %v1196
        %v1217 = vadd.f32 %v537, %v1198
        %v1218 = vadd.f32 %v533, %v1200
        %v1219 = vadd.f32 %v537, %v1202
        %v1221 = vunpack.c.l.b16 %v526
        %v1222 = vunpack.c.h.b16 %v526
        %v1223 = vpack.c.b16 %v1221, %v1221
        %v1224 = vpack.c.b16 %v1222, %v1222
        %v1226 = vshrl.u32 %v1223, 16
        %v1228 = vrot.slane %v1226, 4
        %v1229 = vshll.u32 %v1223, 16
        %v1231 = vrot.slane %v1229, 5
        %v1232 = vor.u32 %v1228, %v1231
        %v1233 = vrot.slane %v1232, 4
        %v1235 = vshll.u32 %v1224, 16
        %v1237 = vrot.slane %v1235, 5
        %v1238 = vsel %vm582, %v1233, %v1237
        %v1239 = vrot.slane %v1223, 5
        %v1240 = vrot.slane %v1239, 4
        %v1241 = vrot.slane %v1224, 5
        %v1242 = vsel %vm697, %v1240, %v1241
        %v1243 = vpack.c.b16 %v552, %v550
        %v1244 = vpack.c.b16 %v556, %v554
        %v1245 = vpack.c.b16 %v560, %v558
        %v1246 = vpack.c.b16 %v1221, %v562
        %v1251 = vunpack.c.l.b16 %v1238
        %v1252 = vpack.c.b16 %v740, %v739
        %v1253 = vpack.c.b16 %v742, %v741
        %v1254 = vpack.c.b16 %v744, %v743
        %v1255 = vpack.c.b16 %v1251, %v745
        %v1260 = vunpack.c.l.b16 %v1242
        %v1261 = vpack.c.b16 %v756, %v755
        %v1262 = vpack.c.b16 %v758, %v757
        %v1263 = vpack.c.b16 %v760, %v759
        %v1264 = vpack.c.b16 %v1260, %v761
        %s1269 = scalar_lea.vmem %s3, 384
        %v1270 = vld [vmem:[%s1269] sm:$0xff]
        %v1271 = vld [vmem:[%s1269 + $0x8] sm:$0xff]
        %v1272 = vld [vmem:[%s1269 + $0x10] sm:$0xff]
        %v1273 = vld [vmem:[%s1269 + $0x18] sm:$0xff]
        %v1274 = vld [vmem:[%s1269 + $0x20] sm:$0xff]
        %v1275 = vld [vmem:[%s1269 + $0x28] sm:$0xff]
        %v1276 = vld [vmem:[%s1269 + $0x30] sm:$0xff]
        %v1277 = vld [vmem:[%s1269 + $0x38] sm:$0xff]
        %v1278 = vld [vmem:[%s1269 + $0x40] sm:$0xff]
        %v1279 = vld [vmem:[%s1269 + $0x48] sm:$0xff]
        %v1280 = vld [vmem:[%s1269 + $0x50] sm:$0xff]
        %v1281 = vld [vmem:[%s1269 + $0x58] sm:$0xff]
        %v1282 = vld [vmem:[%s1269 + $0x60] sm:$0xff]
        %v1283 = vld [vmem:[%s1269 + $0x68] sm:$0xff]
        %v1284 = vld [vmem:[%s1269 + $0x70] sm:$0xff]
        %v1285 = vld [vmem:[%s1269 + $0x78] sm:$0xff]
        %v1286 = vld [vmem:[%s1269 + $0x80] sm:$0xff]
        %v1287 = vld [vmem:[%s1269 + $0x88] sm:$0xff]
        %v1288 = vld [vmem:[%s1269 + $0x90] sm:$0xff]
        %v1289 = vld [vmem:[%s1269 + $0x98] sm:$0xff]
        %v1290 = vld [vmem:[%s1269 + $0xa0] sm:$0xff]
        %v1291 = vld [vmem:[%s1269 + $0xa8] sm:$0xff]
        %v1292 = vld [vmem:[%s1269 + $0xb0] sm:$0xff]
        %v1293 = vld [vmem:[%s1269 + $0xb8] sm:$0xff]
        %v1294 = vld [vmem:[%s1269 + $0xc0] sm:$0xff]
        %v1295 = vld [vmem:[%s1269 + $0xc8] sm:$0xff]
        %v1296 = vld [vmem:[%s1269 + $0xd0] sm:$0xff]
        %v1297 = vld [vmem:[%s1269 + $0xd8] sm:$0xff]
        %v1298 = vld [vmem:[%s1269 + $0xe0] sm:$0xff]
        %v1299 = vld [vmem:[%s1269 + $0xe8] sm:$0xff]
        %v1300 = vld [vmem:[%s1269 + $0xf0] sm:$0xff]
        %v1301 = vld [vmem:[%s1269 + $0xf8] sm:$0xff]
        %v1302 = vld [vmem:[%s1269 + $0x100] sm:$0xff]
        %v1303 = vld [vmem:[%s1269 + $0x108] sm:$0xff]
        %v1304 = vld [vmem:[%s1269 + $0x110] sm:$0xff]
        %v1305 = vld [vmem:[%s1269 + $0x118] sm:$0xff]
        %v1306 = vld [vmem:[%s1269 + $0x120] sm:$0xff]
        %v1307 = vld [vmem:[%s1269 + $0x128] sm:$0xff]
        %v1308 = vld [vmem:[%s1269 + $0x130] sm:$0xff]
        %v1309 = vld [vmem:[%s1269 + $0x138] sm:$0xff]
        %v1310 = vld [vmem:[%s1269 + $0x140] sm:$0xff]
        %v1311 = vld [vmem:[%s1269 + $0x148] sm:$0xff]
        %v1312 = vld [vmem:[%s1269 + $0x150] sm:$0xff]
        %v1313 = vld [vmem:[%s1269 + $0x158] sm:$0xff]
        %v1314 = vld [vmem:[%s1269 + $0x160] sm:$0xff]
        %v1315 = vld [vmem:[%s1269 + $0x168] sm:$0xff]
        %v1316 = vld [vmem:[%s1269 + $0x170] sm:$0xff]
        %v1317 = vld [vmem:[%s1269 + $0x178] sm:$0xff]
        %v1366 = vunpack.c.l.b16 %v1270
        %v1367 = vunpack.c.h.b16 %v1270
        %v1368 = vunpack.c.l.b16 %v1271
        %v1369 = vunpack.c.h.b16 %v1271
        %v1370 = vunpack.c.l.b16 %v1272
        %v1371 = vunpack.c.h.b16 %v1272
        %v1372 = vunpack.c.l.b16 %v1273
        %v1373 = vunpack.c.h.b16 %v1273
        %v1374 = vunpack.c.l.b16 %v1274
        %v1375 = vunpack.c.h.b16 %v1274
        %v1376 = vunpack.c.l.b16 %v1275
        %v1377 = vunpack.c.h.b16 %v1275
        %v1378 = vunpack.c.l.b16 %v1276
        %v1379 = vunpack.c.h.b16 %v1276
        %v1380 = vunpack.c.l.b16 %v1277
        %v1381 = vunpack.c.h.b16 %v1277
        %v1382 = vunpack.c.l.b16 %v1278
        %v1383 = vunpack.c.h.b16 %v1278
        %v1384 = vunpack.c.l.b16 %v1279
        %v1385 = vunpack.c.h.b16 %v1279
        %v1386 = vunpack.c.l.b16 %v1280
        %v1387 = vunpack.c.h.b16 %v1280
        %v1388 = vunpack.c.l.b16 %v1281
        %v1389 = vunpack.c.h.b16 %v1281
        %v1390 = vunpack.c.l.b16 %v1282
        %v1391 = vunpack.c.h.b16 %v1282
        %v1392 = vunpack.c.l.b16 %v1283
        %v1393 = vunpack.c.h.b16 %v1283
        %v1394 = vunpack.c.l.b16 %v1284
        %v1395 = vunpack.c.h.b16 %v1284
        %v1396 = vunpack.c.l.b16 %v1285
        %v1397 = vunpack.c.h.b16 %v1285
        %v1398 = vunpack.c.l.b16 %v1286
        %v1399 = vunpack.c.h.b16 %v1286
        %v1400 = vunpack.c.l.b16 %v1287
        %v1401 = vunpack.c.h.b16 %v1287
        %v1402 = vunpack.c.l.b16 %v1288
        %v1403 = vunpack.c.h.b16 %v1288
        %v1404 = vunpack.c.l.b16 %v1289
        %v1405 = vunpack.c.h.b16 %v1289
        %v1406 = vunpack.c.l.b16 %v1290
        %v1407 = vunpack.c.h.b16 %v1290
        %v1408 = vunpack.c.l.b16 %v1291
        %v1409 = vunpack.c.h.b16 %v1291
        %v1410 = vunpack.c.l.b16 %v1292
        %v1411 = vunpack.c.h.b16 %v1292
        %v1412 = vunpack.c.l.b16 %v1293
        %v1413 = vunpack.c.h.b16 %v1293
        %v1414 = vunpack.c.l.b16 %v1294
        %v1415 = vunpack.c.h.b16 %v1294
        %v1416 = vunpack.c.l.b16 %v1295
        %v1417 = vunpack.c.h.b16 %v1295
        %v1418 = vunpack.c.l.b16 %v1296
        %v1419 = vunpack.c.h.b16 %v1296
        %v1420 = vunpack.c.l.b16 %v1297
        %v1421 = vunpack.c.h.b16 %v1297
        %v1422 = vunpack.c.l.b16 %v1298
        %v1423 = vunpack.c.h.b16 %v1298
        %v1424 = vunpack.c.l.b16 %v1299
        %v1425 = vunpack.c.h.b16 %v1299
        %v1426 = vunpack.c.l.b16 %v1300
        %v1427 = vunpack.c.h.b16 %v1300
        %v1428 = vunpack.c.l.b16 %v1301
        %v1429 = vunpack.c.h.b16 %v1301
        %v1430 = vunpack.c.l.b16 %v1302
        %v1431 = vunpack.c.h.b16 %v1302
        %v1432 = vunpack.c.l.b16 %v1303
        %v1433 = vunpack.c.h.b16 %v1303
        %v1434 = vunpack.c.l.b16 %v1304
        %v1435 = vunpack.c.h.b16 %v1304
        %v1436 = vunpack.c.l.b16 %v1305
        %v1437 = vunpack.c.h.b16 %v1305
        %v1438 = vunpack.c.l.b16 %v1306
        %v1439 = vunpack.c.h.b16 %v1306
        %v1440 = vunpack.c.l.b16 %v1307
        %v1441 = vunpack.c.h.b16 %v1307
        %v1442 = vunpack.c.l.b16 %v1308
        %v1443 = vunpack.c.h.b16 %v1308
        %v1444 = vunpack.c.l.b16 %v1309
        %v1445 = vunpack.c.h.b16 %v1309
        %v1446 = vunpack.c.l.b16 %v1310
        %v1447 = vunpack.c.h.b16 %v1310
        %v1448 = vunpack.c.l.b16 %v1311
        %v1449 = vunpack.c.h.b16 %v1311
        %v1450 = vunpack.c.l.b16 %v1312
        %v1451 = vunpack.c.h.b16 %v1312
        %v1452 = vunpack.c.l.b16 %v1313
        %v1453 = vunpack.c.h.b16 %v1313
        %v1454 = vunpack.c.l.b16 %v1314
        %v1455 = vunpack.c.h.b16 %v1314
        %v1456 = vunpack.c.l.b16 %v1315
        %v1457 = vunpack.c.h.b16 %v1315
        %v1458 = vunpack.c.l.b16 %v1316
        %v1459 = vunpack.c.h.b16 %v1316
        %v1460 = vunpack.c.l.b16 %v1317
        %v1461 = vunpack.c.h.b16 %v1317
        %v1462 = vpack.c.b16 %v1368, %v1366
        %v1463 = vpack.c.b16 %v1369, %v1367
        %v1464 = vpack.c.b16 %v1372, %v1370
        %v1465 = vpack.c.b16 %v1373, %v1371
        %v1466 = vpack.c.b16 %v1376, %v1374
        %v1467 = vpack.c.b16 %v1377, %v1375
        %v1468 = vpack.c.b16 %v1380, %v1378
        %v1469 = vpack.c.b16 %v1381, %v1379
        %v1470 = vpack.c.b16 %v1384, %v1382
        %v1471 = vpack.c.b16 %v1385, %v1383
        %v1472 = vpack.c.b16 %v1388, %v1386
        %v1473 = vpack.c.b16 %v1389, %v1387
        %v1474 = vpack.c.b16 %v1392, %v1390
        %v1475 = vpack.c.b16 %v1393, %v1391
        %v1476 = vpack.c.b16 %v1396, %v1394
        %v1477 = vpack.c.b16 %v1397, %v1395
        %v1478 = vpack.c.b16 %v1400, %v1398
        %v1479 = vpack.c.b16 %v1401, %v1399
        %v1480 = vpack.c.b16 %v1404, %v1402
        %v1481 = vpack.c.b16 %v1405, %v1403
        %v1482 = vpack.c.b16 %v1408, %v1406
        %v1483 = vpack.c.b16 %v1409, %v1407
        %v1484 = vpack.c.b16 %v1412, %v1410
        %v1485 = vpack.c.b16 %v1413, %v1411
        %v1486 = vpack.c.b16 %v1416, %v1414
        %v1487 = vpack.c.b16 %v1417, %v1415
        %v1488 = vpack.c.b16 %v1420, %v1418
        %v1489 = vpack.c.b16 %v1421, %v1419
        %v1490 = vpack.c.b16 %v1424, %v1422
        %v1491 = vpack.c.b16 %v1425, %v1423
        %v1492 = vpack.c.b16 %v1428, %v1426
        %v1493 = vpack.c.b16 %v1429, %v1427
        %v1494 = vpack.c.b16 %v1432, %v1430
        %v1495 = vpack.c.b16 %v1433, %v1431
        %v1496 = vpack.c.b16 %v1436, %v1434
        %v1497 = vpack.c.b16 %v1437, %v1435
        %v1498 = vpack.c.b16 %v1440, %v1438
        %v1499 = vpack.c.b16 %v1441, %v1439
        %v1500 = vpack.c.b16 %v1444, %v1442
        %v1501 = vpack.c.b16 %v1445, %v1443
        %v1502 = vpack.c.b16 %v1448, %v1446
        %v1503 = vpack.c.b16 %v1449, %v1447
        %v1504 = vpack.c.b16 %v1452, %v1450
        %v1505 = vpack.c.b16 %v1453, %v1451
        %v1506 = vpack.c.b16 %v1456, %v1454
        %v1507 = vpack.c.b16 %v1457, %v1455
        %v1508 = vpack.c.b16 %v1460, %v1458
        %v1509 = vpack.c.b16 %v1461, %v1459
        %1558 = vmatprep.subr.bf16.mxu0 %v1463
        %1559 = vmatpush1.bf16.msra.mxu0 %v1462
        %1560 = vmatprep.subr.bf16.mxu0 %v1465
        %1561 = vmatpush1.bf16.msra.mxu0 %v1464
        %1562 = vmatprep.subr.bf16.mxu0 %v1467
        %1563 = vmatpush1.bf16.msra.mxu0 %v1466
        %1564 = vmatprep.subr.bf16.mxu0 %v1469
        %1565 = vmatpush1.bf16.msra.mxu0 %v1468
        %1566 = vmatprep.subr.bf16.mxu0 %v1471
        %1567 = vmatpush1.bf16.msra.mxu0 %v1470
        %1568 = vmatprep.subr.bf16.mxu0 %v1473
        %1569 = vmatpush1.bf16.msra.mxu0 %v1472
        %1570 = vmatprep.subr.bf16.mxu0 %v1475
        %1571 = vmatpush1.bf16.msra.mxu0 %v1474
        %1572 = vmatprep.subr.bf16.mxu0 %v1477
        %1573 = vmatpush1.bf16.msra.mxu0 %v1476
        %1574 = vmatprep.subr.bf16.mxu0 %v1479
        %1575 = vmatpush1.bf16.msra.mxu0 %v1478
        %1576 = vmatprep.subr.bf16.mxu0 %v1481
        %1577 = vmatpush1.bf16.msra.mxu0 %v1480
        %1578 = vmatprep.subr.bf16.mxu0 %v1483
        %1579 = vmatpush1.bf16.msra.mxu0 %v1482
        %1580 = vmatprep.subr.bf16.mxu0 %v1485
        %1581 = vmatpush1.bf16.msra.mxu0 %v1484
        %1582 = vmatprep.subr.bf16.mxu0 %v1487
        %1583 = vmatpush1.bf16.msra.mxu0 %v1486
        %1584 = vmatprep.subr.bf16.mxu0 %v1489
        %1585 = vmatpush1.bf16.msra.mxu0 %v1488
        %1586 = vmatprep.subr.bf16.mxu0 %v1491
        %1587 = vmatpush1.bf16.msra.mxu0 %v1490
        %1588 = vmatprep.subr.bf16.mxu0 %v1493
        %1589 = vmatpush1.bf16.msra.mxu0 %v1492
        %1590 = vmatprep.mubr.bf16.mxu0 %v1252
        %1591 = vmatmul.mubr.bf16.gmra.mrb[0].mxu0 %v1243
        %v1592 = vpop.f32.mrb[0].mxu0
        %v1593 = vadd.f32 0.0, %v1592
        %v1594 = vpop.f32.mrb[0].mxu0
        %v1595 = vadd.f32 0.0, %v1594
        %v1596 = vpop.f32.mrb[0].mxu0
        %v1597 = vadd.f32 0.0, %v1596
        %v1598 = vpop.f32.mrb[0].mxu0
        %v1599 = vadd.f32 0.0, %v1598
        %1600 = vmatprep.mubr.bf16.mxu0 %v1253
        %1601 = vmatmul.mubr.bf16.gmra.mrb[0].mxu0 %v1244
        %v1602 = vpop.f32.mrb[0].mxu0
        %v1603 = vadd.f32 0.0, %v1602
        %v1604 = vpop.f32.mrb[0].mxu0
        %v1605 = vadd.f32 0.0, %v1604
        %v1606 = vpop.f32.mrb[0].mxu0
        %v1607 = vadd.f32 0.0, %v1606
        %v1608 = vpop.f32.mrb[0].mxu0
        %v1609 = vadd.f32 0.0, %v1608
        %1610 = vmatprep.mubr.bf16.mxu0 %v1254
        %1611 = vmatmul.mubr.bf16.gmra.mrb[0].mxu0 %v1245
        %v1612 = vpop.f32.mrb[0].mxu0
        %v1613 = vadd.f32 0.0, %v1612
        %v1614 = vpop.f32.mrb[0].mxu0
        %v1615 = vadd.f32 0.0, %v1614
        %v1616 = vpop.f32.mrb[0].mxu0
        %v1617 = vadd.f32 0.0, %v1616
        %v1618 = vpop.f32.mrb[0].mxu0
        %v1619 = vadd.f32 0.0, %v1618
        %1620 = vmatprep.mubr.bf16.mxu0 %v1255
        %1621 = vmatmul.mubr.bf16.gmra.mrb[0].mxu0 %v1246
        %v1622 = vpop.f32.mrb[0].mxu0
        %v1623 = vadd.f32 0.0, %v1622
        %v1624 = vpop.f32.mrb[0].mxu0
        %v1625 = vadd.f32 0.0, %v1624
        %v1626 = vpop.f32.mrb[0].mxu0
        %v1627 = vadd.f32 0.0, %v1626
        %v1628 = vpop.f32.mrb[0].mxu0
        %v1629 = vadd.f32 0.0, %v1628
        %1630 = vdwg.mxu0
        %1631 = vmatprep.subr.bf16.mxu0 %v1495
        %1632 = vmatpush1.bf16.msra.mxu0 %v1494
        %1633 = vmatprep.subr.bf16.mxu0 %v1497
        %1634 = vmatpush1.bf16.msra.mxu0 %v1496
        %1635 = vmatprep.subr.bf16.mxu0 %v1499
        %1636 = vmatpush1.bf16.msra.mxu0 %v1498
        %1637 = vmatprep.subr.bf16.mxu0 %v1501
        %1638 = vmatpush1.bf16.msra.mxu0 %v1500
        %1639 = vmatprep.subr.bf16.mxu0 %v1503
        %1640 = vmatpush1.bf16.msra.mxu0 %v1502
        %1641 = vmatprep.subr.bf16.mxu0 %v1505
        %1642 = vmatpush1.bf16.msra.mxu0 %v1504
        %1643 = vmatprep.subr.bf16.mxu0 %v1507
        %1644 = vmatpush1.bf16.msra.mxu0 %v1506
        %1645 = vmatprep.subr.bf16.mxu0 %v1509
        %1646 = vmatpush1.bf16.msra.mxu0 %v1508
        %1647 = vmatprep.subr.bf16.mxu0 0
        %1648 = vmatpush1.bf16.msra.mxu0 0
        %1649 = vmatprep.subr.bf16.mxu0 0
        %1650 = vmatpush1.bf16.msra.mxu0 0
        %1651 = vmatprep.subr.bf16.mxu0 0
        %1652 = vmatpush1.bf16.msra.mxu0 0
        %1653 = vmatprep.subr.bf16.mxu0 0
        %1654 = vmatpush1.bf16.msra.mxu0 0
        %1655 = vmatprep.subr.bf16.mxu0 0
        %1656 = vmatpush1.bf16.msra.mxu0 0
        %1657 = vmatprep.subr.bf16.mxu0 0
        %1658 = vmatpush1.bf16.msra.mxu0 0
        %1659 = vmatprep.subr.bf16.mxu0 0
        %1660 = vmatpush1.bf16.msra.mxu0 0
        %1661 = vmatprep.subr.bf16.mxu0 0
        %1662 = vmatpush1.bf16.msra.mxu0 0
        %1663 = vmatprep.mubr.bf16.mxu0 0
        %1664 = vmatmul.mubr.bf16.gmra.mrb[0].mxu0 %v1261
        %v1665 = vpop.f32.mrb[0].mxu0
        %v1666 = vadd.f32 %v1593, %v1665
        %v1667 = vpop.f32.mrb[0].mxu0
        %v1668 = vadd.f32 %v1595, %v1667
        %v1669 = vpop.f32.mrb[0].mxu0
        %v1670 = vadd.f32 %v1597, %v1669
        %v1671 = vpop.f32.mrb[0].mxu0
        %v1672 = vadd.f32 %v1599, %v1671
        %1673 = vmatprep.mubr.bf16.mxu0 0
        %1674 = vmatmul.mubr.bf16.gmra.mrb[0].mxu0 %v1262
        %v1675 = vpop.f32.mrb[0].mxu0
        %v1676 = vadd.f32 %v1603, %v1675
        %v1677 = vpop.f32.mrb[0].mxu0
        %v1678 = vadd.f32 %v1605, %v1677
        %v1679 = vpop.f32.mrb[0].mxu0
        %v1680 = vadd.f32 %v1607, %v1679
        %v1681 = vpop.f32.mrb[0].mxu0
        %v1682 = vadd.f32 %v1609, %v1681
        %1683 = vmatprep.mubr.bf16.mxu0 0
        %1684 = vmatmul.mubr.bf16.gmra.mrb[0].mxu0 %v1263
        %v1685 = vpop.f32.mrb[0].mxu0
        %v1686 = vadd.f32 %v1613, %v1685
        %v1687 = vpop.f32.mrb[0].mxu0
        %v1688 = vadd.f32 %v1615, %v1687
        %v1689 = vpop.f32.mrb[0].mxu0
        %v1690 = vadd.f32 %v1617, %v1689
        %v1691 = vpop.f32.mrb[0].mxu0
        %v1692 = vadd.f32 %v1619, %v1691
        %1693 = vmatprep.mubr.bf16.mxu0 0
        %1694 = vmatmul.mubr.bf16.gmra.mrb[0].mxu0 %v1264
        %v1695 = vpop.f32.mrb[0].mxu0
        %v1696 = vadd.f32 %v1623, %v1695
        %v1697 = vpop.f32.mrb[0].mxu0
        %v1698 = vadd.f32 %v1625, %v1697
        %v1699 = vpop.f32.mrb[0].mxu0
        %v1700 = vadd.f32 %v1627, %v1699
        %v1701 = vpop.f32.mrb[0].mxu0
        %v1702 = vadd.f32 %v1629, %v1701
        %1703 = vdwg.mxu0
        %v1704 = vadd.f32 %v1204, %v1666
        %v1705 = vadd.f32 %v1205, %v1668
        %v1706 = vadd.f32 %v1206, %v1670
        %v1707 = vadd.f32 %v1207, %v1672
        %v1708 = vadd.f32 %v1208, %v1676
        %v1709 = vadd.f32 %v1209, %v1678
        %v1710 = vadd.f32 %v1210, %v1680
        %v1711 = vadd.f32 %v1211, %v1682
        %v1712 = vadd.f32 %v1212, %v1686
        %v1713 = vadd.f32 %v1213, %v1688
        %v1714 = vadd.f32 %v1214, %v1690
        %v1715 = vadd.f32 %v1215, %v1692
        %v1716 = vadd.f32 %v1216, %v1696
        %v1717 = vadd.f32 %v1217, %v1698
        %v1718 = vadd.f32 %v1218, %v1700
        %v1719 = vadd.f32 %v1219, %v1702
        %v1721 = vunpack.c.l.b16 %v527
        %v1722 = vunpack.c.h.b16 %v527
        %v1723 = vpack.c.b16 %v1721, %v1721
        %v1724 = vpack.c.b16 %v1722, %v1722
        %v1726 = vshrl.u32 %v1723, 16
        %v1728 = vrot.slane %v1726, 4
        %v1729 = vshll.u32 %v1723, 16
        %v1731 = vrot.slane %v1729, 5
        %v1732 = vor.u32 %v1728, %v1731
        %v1733 = vrot.slane %v1732, 4
        %v1735 = vshll.u32 %v1724, 16
        %v1737 = vrot.slane %v1735, 5
        %v1738 = vsel %vm582, %v1733, %v1737
        %v1739 = vrot.slane %v1723, 5
        %v1740 = vrot.slane %v1739, 4
        %v1741 = vrot.slane %v1724, 5
        %v1742 = vsel %vm697, %v1740, %v1741
        %v1743 = vpack.c.b16 %v1721, %v1221
        %v1745 = vunpack.c.l.b16 %v1738
        %v1746 = vpack.c.b16 %v1745, %v1251
        %v1748 = vunpack.c.l.b16 %v1742
        %v1749 = vpack.c.b16 %v1748, %v1260
        %s1751 = scalar_lea.vmem %s3, 768
        %v1752 = vld [vmem:[%s1751] sm:$0xff]
        %v1753 = vld [vmem:[%s1751 + $0x8] sm:$0xff]
        %v1754 = vld [vmem:[%s1751 + $0x10] sm:$0xff]
        %v1755 = vld [vmem:[%s1751 + $0x18] sm:$0xff]
        %v1756 = vld [vmem:[%s1751 + $0x20] sm:$0xff]
        %v1757 = vld [vmem:[%s1751 + $0x28] sm:$0xff]
        %v1758 = vld [vmem:[%s1751 + $0x30] sm:$0xff]
        %v1759 = vld [vmem:[%s1751 + $0x38] sm:$0xff]
        %v1760 = vld [vmem:[%s1751 + $0x40] sm:$0xff]
        %v1761 = vld [vmem:[%s1751 + $0x48] sm:$0xff]
        %v1762 = vld [vmem:[%s1751 + $0x50] sm:$0xff]
        %v1763 = vld [vmem:[%s1751 + $0x58] sm:$0xff]
        %v1764 = vld [vmem:[%s1751 + $0x60] sm:$0xff]
        %v1765 = vld [vmem:[%s1751 + $0x68] sm:$0xff]
        %v1766 = vld [vmem:[%s1751 + $0x70] sm:$0xff]
        %v1767 = vld [vmem:[%s1751 + $0x78] sm:$0xff]
        %v1768 = vld [vmem:[%s1751 + $0x80] sm:$0xff]
        %v1769 = vld [vmem:[%s1751 + $0x88] sm:$0xff]
        %v1770 = vld [vmem:[%s1751 + $0x90] sm:$0xff]
        %v1771 = vld [vmem:[%s1751 + $0x98] sm:$0xff]
        %v1772 = vld [vmem:[%s1751 + $0xa0] sm:$0xff]
        %v1773 = vld [vmem:[%s1751 + $0xa8] sm:$0xff]
        %v1774 = vld [vmem:[%s1751 + $0xb0] sm:$0xff]
        %v1775 = vld [vmem:[%s1751 + $0xb8] sm:$0xff]
        %v1776 = vld [vmem:[%s1751 + $0xc0] sm:$0xff]
        %v1777 = vld [vmem:[%s1751 + $0xc8] sm:$0xff]
        %v1778 = vld [vmem:[%s1751 + $0xd0] sm:$0xff]
        %v1779 = vld [vmem:[%s1751 + $0xd8] sm:$0xff]
        %v1780 = vld [vmem:[%s1751 + $0xe0] sm:$0xff]
        %v1781 = vld [vmem:[%s1751 + $0xe8] sm:$0xff]
        %v1782 = vld [vmem:[%s1751 + $0xf0] sm:$0xff]
        %v1783 = vld [vmem:[%s1751 + $0xf8] sm:$0xff]
        %v1784 = vld [vmem:[%s1751 + $0x100] sm:$0xff]
        %v1785 = vld [vmem:[%s1751 + $0x108] sm:$0xff]
        %v1786 = vld [vmem:[%s1751 + $0x110] sm:$0xff]
        %v1787 = vld [vmem:[%s1751 + $0x118] sm:$0xff]
        %v1788 = vld [vmem:[%s1751 + $0x120] sm:$0xff]
        %v1789 = vld [vmem:[%s1751 + $0x128] sm:$0xff]
        %v1790 = vld [vmem:[%s1751 + $0x130] sm:$0xff]
        %v1791 = vld [vmem:[%s1751 + $0x138] sm:$0xff]
        %v1792 = vld [vmem:[%s1751 + $0x140] sm:$0xff]
        %v1793 = vld [vmem:[%s1751 + $0x148] sm:$0xff]
        %v1794 = vld [vmem:[%s1751 + $0x150] sm:$0xff]
        %v1795 = vld [vmem:[%s1751 + $0x158] sm:$0xff]
        %v1796 = vld [vmem:[%s1751 + $0x160] sm:$0xff]
        %v1797 = vld [vmem:[%s1751 + $0x168] sm:$0xff]
        %v1798 = vld [vmem:[%s1751 + $0x170] sm:$0xff]
        %v1799 = vld [vmem:[%s1751 + $0x178] sm:$0xff]
        %v1848 = vunpack.c.l.b16 %v1752
        %v1849 = vunpack.c.h.b16 %v1752
        %v1850 = vunpack.c.l.b16 %v1753
        %v1851 = vunpack.c.h.b16 %v1753
        %v1852 = vunpack.c.l.b16 %v1754
        %v1853 = vunpack.c.h.b16 %v1754
        %v1854 = vunpack.c.l.b16 %v1755
        %v1855 = vunpack.c.h.b16 %v1755
        %v1856 = vunpack.c.l.b16 %v1756
        %v1857 = vunpack.c.h.b16 %v1756
        %v1858 = vunpack.c.l.b16 %v1757
        %v1859 = vunpack.c.h.b16 %v1757
        %v1860 = vunpack.c.l.b16 %v1758
        %v1861 = vunpack.c.h.b16 %v1758
        %v1862 = vunpack.c.l.b16 %v1759
        %v1863 = vunpack.c.h.b16 %v1759
        %v1864 = vunpack.c.l.b16 %v1760
        %v1865 = vunpack.c.h.b16 %v1760
        %v1866 = vunpack.c.l.b16 %v1761
        %v1867 = vunpack.c.h.b16 %v1761
        %v1868 = vunpack.c.l.b16 %v1762
        %v1869 = vunpack.c.h.b16 %v1762
        %v1870 = vunpack.c.l.b16 %v1763
        %v1871 = vunpack.c.h.b16 %v1763
        %v1872 = vunpack.c.l.b16 %v1764
        %v1873 = vunpack.c.h.b16 %v1764
        %v1874 = vunpack.c.l.b16 %v1765
        %v1875 = vunpack.c.h.b16 %v1765
        %v1876 = vunpack.c.l.b16 %v1766
        %v1877 = vunpack.c.h.b16 %v1766
        %v1878 = vunpack.c.l.b16 %v1767
        %v1879 = vunpack.c.h.b16 %v1767
        %v1880 = vunpack.c.l.b16 %v1768
        %v1881 = vunpack.c.h.b16 %v1768
        %v1882 = vunpack.c.l.b16 %v1769
        %v1883 = vunpack.c.h.b16 %v1769
        %v1884 = vunpack.c.l.b16 %v1770
        %v1885 = vunpack.c.h.b16 %v1770
        %v1886 = vunpack.c.l.b16 %v1771
        %v1887 = vunpack.c.h.b16 %v1771
        %v1888 = vunpack.c.l.b16 %v1772
        %v1889 = vunpack.c.h.b16 %v1772
        %v1890 = vunpack.c.l.b16 %v1773
        %v1891 = vunpack.c.h.b16 %v1773
        %v1892 = vunpack.c.l.b16 %v1774
        %v1893 = vunpack.c.h.b16 %v1774
        %v1894 = vunpack.c.l.b16 %v1775
        %v1895 = vunpack.c.h.b16 %v1775
        %v1896 = vunpack.c.l.b16 %v1776
        %v1897 = vunpack.c.h.b16 %v1776
        %v1898 = vunpack.c.l.b16 %v1777
        %v1899 = vunpack.c.h.b16 %v1777
        %v1900 = vunpack.c.l.b16 %v1778
        %v1901 = vunpack.c.h.b16 %v1778
        %v1902 = vunpack.c.l.b16 %v1779
        %v1903 = vunpack.c.h.b16 %v1779
        %v1904 = vunpack.c.l.b16 %v1780
        %v1905 = vunpack.c.h.b16 %v1780
        %v1906 = vunpack.c.l.b16 %v1781
        %v1907 = vunpack.c.h.b16 %v1781
        %v1908 = vunpack.c.l.b16 %v1782
        %v1909 = vunpack.c.h.b16 %v1782
        %v1910 = vunpack.c.l.b16 %v1783
        %v1911 = vunpack.c.h.b16 %v1783
        %v1912 = vunpack.c.l.b16 %v1784
        %v1913 = vunpack.c.h.b16 %v1784
        %v1914 = vunpack.c.l.b16 %v1785
        %v1915 = vunpack.c.h.b16 %v1785
        %v1916 = vunpack.c.l.b16 %v1786
        %v1917 = vunpack.c.h.b16 %v1786
        %v1918 = vunpack.c.l.b16 %v1787
        %v1919 = vunpack.c.h.b16 %v1787
        %v1920 = vunpack.c.l.b16 %v1788
        %v1921 = vunpack.c.h.b16 %v1788
        %v1922 = vunpack.c.l.b16 %v1789
        %v1923 = vunpack.c.h.b16 %v1789
        %v1924 = vunpack.c.l.b16 %v1790
        %v1925 = vunpack.c.h.b16 %v1790
        %v1926 = vunpack.c.l.b16 %v1791
        %v1927 = vunpack.c.h.b16 %v1791
        %v1928 = vunpack.c.l.b16 %v1792
        %v1929 = vunpack.c.h.b16 %v1792
        %v1930 = vunpack.c.l.b16 %v1793
        %v1931 = vunpack.c.h.b16 %v1793
        %v1932 = vunpack.c.l.b16 %v1794
        %v1933 = vunpack.c.h.b16 %v1794
        %v1934 = vunpack.c.l.b16 %v1795
        %v1935 = vunpack.c.h.b16 %v1795
        %v1936 = vunpack.c.l.b16 %v1796
        %v1937 = vunpack.c.h.b16 %v1796
        %v1938 = vunpack.c.l.b16 %v1797
        %v1939 = vunpack.c.h.b16 %v1797
        %v1940 = vunpack.c.l.b16 %v1798
        %v1941 = vunpack.c.h.b16 %v1798
        %v1942 = vunpack.c.l.b16 %v1799
        %v1943 = vunpack.c.h.b16 %v1799
        %v1944 = vpack.c.b16 %v1850, %v1848
        %v1945 = vpack.c.b16 %v1851, %v1849
        %v1946 = vpack.c.b16 %v1854, %v1852
        %v1947 = vpack.c.b16 %v1855, %v1853
        %v1948 = vpack.c.b16 %v1858, %v1856
        %v1949 = vpack.c.b16 %v1859, %v1857
        %v1950 = vpack.c.b16 %v1862, %v1860
        %v1951 = vpack.c.b16 %v1863, %v1861
        %v1952 = vpack.c.b16 %v1866, %v1864
        %v1953 = vpack.c.b16 %v1867, %v1865
        %v1954 = vpack.c.b16 %v1870, %v1868
        %v1955 = vpack.c.b16 %v1871, %v1869
        %v1956 = vpack.c.b16 %v1874, %v1872
        %v1957 = vpack.c.b16 %v1875, %v1873
        %v1958 = vpack.c.b16 %v1878, %v1876
        %v1959 = vpack.c.b16 %v1879, %v1877
        %v1960 = vpack.c.b16 %v1882, %v1880
        %v1961 = vpack.c.b16 %v1883, %v1881
        %v1962 = vpack.c.b16 %v1886, %v1884
        %v1963 = vpack.c.b16 %v1887, %v1885
        %v1964 = vpack.c.b16 %v1890, %v1888
        %v1965 = vpack.c.b16 %v1891, %v1889
        %v1966 = vpack.c.b16 %v1894, %v1892
        %v1967 = vpack.c.b16 %v1895, %v1893
        %v1968 = vpack.c.b16 %v1898, %v1896
        %v1969 = vpack.c.b16 %v1899, %v1897
        %v1970 = vpack.c.b16 %v1902, %v1900
        %v1971 = vpack.c.b16 %v1903, %v1901
        %v1972 = vpack.c.b16 %v1906, %v1904
        %v1973 = vpack.c.b16 %v1907, %v1905
        %v1974 = vpack.c.b16 %v1910, %v1908
        %v1975 = vpack.c.b16 %v1911, %v1909
        %v1976 = vpack.c.b16 %v1914, %v1912
        %v1977 = vpack.c.b16 %v1915, %v1913
        %v1978 = vpack.c.b16 %v1918, %v1916
        %v1979 = vpack.c.b16 %v1919, %v1917
        %v1980 = vpack.c.b16 %v1922, %v1920
        %v1981 = vpack.c.b16 %v1923, %v1921
        %v1982 = vpack.c.b16 %v1926, %v1924
        %v1983 = vpack.c.b16 %v1927, %v1925
        %v1984 = vpack.c.b16 %v1930, %v1928
        %v1985 = vpack.c.b16 %v1931, %v1929
        %v1986 = vpack.c.b16 %v1934, %v1932
        %v1987 = vpack.c.b16 %v1935, %v1933
        %v1988 = vpack.c.b16 %v1938, %v1936
        %v1989 = vpack.c.b16 %v1939, %v1937
        %v1990 = vpack.c.b16 %v1942, %v1940
        %v1991 = vpack.c.b16 %v1943, %v1941
        %2040 = vmatprep.subr.bf16.mxu0 %v1945
        %2041 = vmatpush1.bf16.msra.mxu0 %v1944
        %2042 = vmatprep.subr.bf16.mxu0 %v1947
        %2043 = vmatpush1.bf16.msra.mxu0 %v1946
        %2044 = vmatprep.subr.bf16.mxu0 %v1949
        %2045 = vmatpush1.bf16.msra.mxu0 %v1948
        %2046 = vmatprep.subr.bf16.mxu0 %v1951
        %2047 = vmatpush1.bf16.msra.mxu0 %v1950
        %2048 = vmatprep.subr.bf16.mxu0 %v1953
        %2049 = vmatpush1.bf16.msra.mxu0 %v1952
        %2050 = vmatprep.subr.bf16.mxu0 %v1955
        %2051 = vmatpush1.bf16.msra.mxu0 %v1954
        %2052 = vmatprep.subr.bf16.mxu0 %v1957
        %2053 = vmatpush1.bf16.msra.mxu0 %v1956
        %2054 = vmatprep.subr.bf16.mxu0 %v1959
        %2055 = vmatpush1.bf16.msra.mxu0 %v1958
        %2056 = vmatprep.subr.bf16.mxu0 %v1961
        %2057 = vmatpush1.bf16.msra.mxu0 %v1960
        %2058 = vmatprep.subr.bf16.mxu0 %v1963
        %2059 = vmatpush1.bf16.msra.mxu0 %v1962
        %2060 = vmatprep.subr.bf16.mxu0 %v1965
        %2061 = vmatpush1.bf16.msra.mxu0 %v1964
        %2062 = vmatprep.subr.bf16.mxu0 %v1967
        %2063 = vmatpush1.bf16.msra.mxu0 %v1966
        %2064 = vmatprep.subr.bf16.mxu0 %v1969
        %2065 = vmatpush1.bf16.msra.mxu0 %v1968
        %2066 = vmatprep.subr.bf16.mxu0 %v1971
        %2067 = vmatpush1.bf16.msra.mxu0 %v1970
        %2068 = vmatprep.subr.bf16.mxu0 %v1973
        %2069 = vmatpush1.bf16.msra.mxu0 %v1972
        %2070 = vmatprep.subr.bf16.mxu0 %v1975
        %2071 = vmatpush1.bf16.msra.mxu0 %v1974
        %2072 = vmatprep.mubr.bf16.mxu0 %v747
        %2073 = vmatmul.mubr.bf16.gmra.mrb[0].mxu0 %v731
        %v2074 = vpop.f32.mrb[0].mxu0
        %v2075 = vadd.f32 0.0, %v2074
        %v2076 = vpop.f32.mrb[0].mxu0
        %v2077 = vadd.f32 0.0, %v2076
        %v2078 = vpop.f32.mrb[0].mxu0
        %v2079 = vadd.f32 0.0, %v2078
        %v2080 = vpop.f32.mrb[0].mxu0
        %v2081 = vadd.f32 0.0, %v2080
        %2082 = vmatprep.mubr.bf16.mxu0 %v748
        %2083 = vmatmul.mubr.bf16.gmra.mrb[0].mxu0 %v732
        %v2084 = vpop.f32.mrb[0].mxu0
        %v2085 = vadd.f32 0.0, %v2084
        %v2086 = vpop.f32.mrb[0].mxu0
        %v2087 = vadd.f32 0.0, %v2086
        %v2088 = vpop.f32.mrb[0].mxu0
        %v2089 = vadd.f32 0.0, %v2088
        %v2090 = vpop.f32.mrb[0].mxu0
        %v2091 = vadd.f32 0.0, %v2090
        %2092 = vmatprep.mubr.bf16.mxu0 %v749
        %2093 = vmatmul.mubr.bf16.gmra.mrb[0].mxu0 %v733
        %v2094 = vpop.f32.mrb[0].mxu0
        %v2095 = vadd.f32 0.0, %v2094
        %v2096 = vpop.f32.mrb[0].mxu0
        %v2097 = vadd.f32 0.0, %v2096
        %v2098 = vpop.f32.mrb[0].mxu0
        %v2099 = vadd.f32 0.0, %v2098
        %v2100 = vpop.f32.mrb[0].mxu0
        %v2101 = vadd.f32 0.0, %v2100
        %2102 = vmatprep.mubr.bf16.mxu0 %v1746
        %2103 = vmatmul.mubr.bf16.gmra.mrb[0].mxu0 %v1743
        %v2104 = vpop.f32.mrb[0].mxu0
        %v2105 = vadd.f32 0.0, %v2104
        %v2106 = vpop.f32.mrb[0].mxu0
        %v2107 = vadd.f32 0.0, %v2106
        %v2108 = vpop.f32.mrb[0].mxu0
        %v2109 = vadd.f32 0.0, %v2108
        %v2110 = vpop.f32.mrb[0].mxu0
        %v2111 = vadd.f32 0.0, %v2110
        %2112 = vdwg.mxu0
        %2113 = vmatprep.subr.bf16.mxu0 %v1977
        %2114 = vmatpush1.bf16.msra.mxu0 %v1976
        %2115 = vmatprep.subr.bf16.mxu0 %v1979
        %2116 = vmatpush1.bf16.msra.mxu0 %v1978
        %2117 = vmatprep.subr.bf16.mxu0 %v1981
        %2118 = vmatpush1.bf16.msra.mxu0 %v1980
        %2119 = vmatprep.subr.bf16.mxu0 %v1983
        %2120 = vmatpush1.bf16.msra.mxu0 %v1982
        %2121 = vmatprep.subr.bf16.mxu0 %v1985
        %2122 = vmatpush1.bf16.msra.mxu0 %v1984
        %2123 = vmatprep.subr.bf16.mxu0 %v1987
        %2124 = vmatpush1.bf16.msra.mxu0 %v1986
        %2125 = vmatprep.subr.bf16.mxu0 %v1989
        %2126 = vmatpush1.bf16.msra.mxu0 %v1988
        %2127 = vmatprep.subr.bf16.mxu0 %v1991
        %2128 = vmatpush1.bf16.msra.mxu0 %v1990
        %2129 = vmatprep.subr.bf16.mxu0 0
        %2130 = vmatpush1.bf16.msra.mxu0 0
        %2131 = vmatprep.subr.bf16.mxu0 0
        %2132 = vmatpush1.bf16.msra.mxu0 0
        %2133 = vmatprep.subr.bf16.mxu0 0
        %2134 = vmatpush1.bf16.msra.mxu0 0
        %2135 = vmatprep.subr.bf16.mxu0 0
        %2136 = vmatpush1.bf16.msra.mxu0 0
        %2137 = vmatprep.subr.bf16.mxu0 0
        %2138 = vmatpush1.bf16.msra.mxu0 0
        %2139 = vmatprep.subr.bf16.mxu0 0
        %2140 = vmatpush1.bf16.msra.mxu0 0
        %2141 = vmatprep.subr.bf16.mxu0 0
        %2142 = vmatpush1.bf16.msra.mxu0 0
        %2143 = vmatprep.subr.bf16.mxu0 0
        %2144 = vmatpush1.bf16.msra.mxu0 0
        %2145 = vmatprep.mubr.bf16.mxu0 0
        %2146 = vmatmul.mubr.bf16.gmra.mrb[0].mxu0 %v763
        %v2147 = vpop.f32.mrb[0].mxu0
        %v2148 = vadd.f32 %v2075, %v2147
        %v2149 = vpop.f32.mrb[0].mxu0
        %v2150 = vadd.f32 %v2077, %v2149
        %v2151 = vpop.f32.mrb[0].mxu0
        %v2152 = vadd.f32 %v2079, %v2151
        %v2153 = vpop.f32.mrb[0].mxu0
        %v2154 = vadd.f32 %v2081, %v2153
        %2155 = vmatprep.mubr.bf16.mxu0 0
        %2156 = vmatmul.mubr.bf16.gmra.mrb[0].mxu0 %v764
        %v2157 = vpop.f32.mrb[0].mxu0
        %v2158 = vadd.f32 %v2085, %v2157
        %v2159 = vpop.f32.mrb[0].mxu0
        %v2160 = vadd.f32 %v2087, %v2159
        %v2161 = vpop.f32.mrb[0].mxu0
        %v2162 = vadd.f32 %v2089, %v2161
        %v2163 = vpop.f32.mrb[0].mxu0
        %v2164 = vadd.f32 %v2091, %v2163
        %2165 = vmatprep.mubr.bf16.mxu0 0
        %2166 = vmatmul.mubr.bf16.gmra.mrb[0].mxu0 %v765
        %v2167 = vpop.f32.mrb[0].mxu0
        %v2168 = vadd.f32 %v2095, %v2167
        %v2169 = vpop.f32.mrb[0].mxu0
        %v2170 = vadd.f32 %v2097, %v2169
        %v2171 = vpop.f32.mrb[0].mxu0
        %v2172 = vadd.f32 %v2099, %v2171
        %v2173 = vpop.f32.mrb[0].mxu0
        %v2174 = vadd.f32 %v2101, %v2173
        %2175 = vmatprep.mubr.bf16.mxu0 0
        %2176 = vmatmul.mubr.bf16.gmra.mrb[0].mxu0 %v1749
        %v2177 = vpop.f32.mrb[0].mxu0
        %v2178 = vadd.f32 %v2105, %v2177
        %v2179 = vpop.f32.mrb[0].mxu0
        %v2180 = vadd.f32 %v2107, %v2179
        %v2181 = vpop.f32.mrb[0].mxu0
        %v2182 = vadd.f32 %v2109, %v2181
        %v2183 = vpop.f32.mrb[0].mxu0
        %v2184 = vadd.f32 %v2111, %v2183
        %2185 = vdwg.mxu0
        %v2186 = vadd.f32 %v1704, %v2148
        %v2187 = vadd.f32 %v1705, %v2150
        %v2188 = vadd.f32 %v1706, %v2152
        %v2189 = vadd.f32 %v1707, %v2154
        %v2190 = vadd.f32 %v1708, %v2158
        %v2191 = vadd.f32 %v1709, %v2160
        %v2192 = vadd.f32 %v1710, %v2162
        %v2193 = vadd.f32 %v1711, %v2164
        %v2194 = vadd.f32 %v1712, %v2168
        %v2195 = vadd.f32 %v1713, %v2170
        %v2196 = vadd.f32 %v1714, %v2172
        %v2197 = vadd.f32 %v1715, %v2174
        %v2198 = vadd.f32 %v1716, %v2178
        %v2199 = vadd.f32 %v1717, %v2180
        %v2200 = vadd.f32 %v1718, %v2182
        %v2201 = vadd.f32 %v1719, %v2184
        %v2202 = vmul.f32 %v2186, 0.1
        %v2203 = vmul.f32 %v2187, 0.1
        %v2204 = vmul.f32 %v2188, 0.1
        %v2205 = vmul.f32 %v2189, 0.1
        %v2206 = vmul.f32 %v2190, 0.1
        %v2207 = vmul.f32 %v2191, 0.1
        %v2208 = vmul.f32 %v2192, 0.1
        %v2209 = vmul.f32 %v2193, 0.1
        %v2210 = vmul.f32 %v2194, 0.1
        %v2211 = vmul.f32 %v2195, 0.1
        %v2212 = vmul.f32 %v2196, 0.1
        %v2213 = vmul.f32 %v2197, 0.1
        %v2214 = vmul.f32 %v2198, 0.1
        %v2215 = vmul.f32 %v2199, 0.1
        %v2216 = vmul.f32 %v2200, 0.1
        %v2217 = vmul.f32 %v2201, 0.1
        %v2218 = vmax.f32 %v2186, %v2202
        %v2219 = vmax.f32 %v2187, %v2203
        %v2220 = vmax.f32 %v2188, %v2204
        %v2221 = vmax.f32 %v2189, %v2205
        %v2222 = vmax.f32 %v2190, %v2206
        %v2223 = vmax.f32 %v2191, %v2207
        %v2224 = vmax.f32 %v2192, %v2208
        %v2225 = vmax.f32 %v2193, %v2209
        %v2226 = vmax.f32 %v2194, %v2210
        %v2227 = vmax.f32 %v2195, %v2211
        %v2228 = vmax.f32 %v2196, %v2212
        %v2229 = vmax.f32 %v2197, %v2213
        %v2230 = vmax.f32 %v2198, %v2214
        %v2231 = vmax.f32 %v2199, %v2215
        %v2232 = vmax.f32 %v2200, %v2216
        %v2233 = vmax.f32 %v2201, %v2217
        %v2234 = vadd.f32 %v224, %v2218
        %v2235 = vadd.f32 %v225, %v2219
        %v2236 = vadd.f32 %v226, %v2220
        %v2237 = vadd.f32 %v227, %v2221
        %v2238 = vadd.f32 %v228, %v2222
        %v2239 = vadd.f32 %v229, %v2223
        %v2240 = vadd.f32 %v230, %v2224
        %v2241 = vadd.f32 %v231, %v2225
        %v2242 = vadd.f32 %v232, %v2226
        %v2243 = vadd.f32 %v233, %v2227
        %v2244 = vadd.f32 %v234, %v2228
        %v2245 = vadd.f32 %v235, %v2229
        %v2246 = vadd.f32 %v236, %v2230
        %v2247 = vadd.f32 %v237, %v2231
        %v2248 = vadd.f32 %v238, %v2232
        %v2249 = vadd.f32 %v239, %v2233
        %2250 = vst [vmem:[%s217] sm:$0xff] %v2234
        %2251 = vst [vmem:[%s217 + $0x8] sm:$0xff] %v2235
        %2252 = vst [vmem:[%s217 + $0x10] sm:$0xff] %v2236
        %2253 = vst [vmem:[%s217 + $0x18] sm:$0xff] %v2237
        %2254 = vst [vmem:[%s217 + $0x20] sm:$0xff] %v2238
        %2255 = vst [vmem:[%s217 + $0x28] sm:$0xff] %v2239
        %2256 = vst [vmem:[%s217 + $0x30] sm:$0xff] %v2240
        %2257 = vst [vmem:[%s217 + $0x38] sm:$0xff] %v2241
        %2258 = vst [vmem:[%s217 + $0x40] sm:$0xff] %v2242
        %2259 = vst [vmem:[%s217 + $0x48] sm:$0xff] %v2243
        %2260 = vst [vmem:[%s217 + $0x50] sm:$0xff] %v2244
        %2261 = vst [vmem:[%s217 + $0x58] sm:$0xff] %v2245
        %2262 = vst [vmem:[%s217 + $0x60] sm:$0xff] %v2246
        %2263 = vst [vmem:[%s217 + $0x68] sm:$0xff] %v2247
        %2264 = vst [vmem:[%s217 + $0x70] sm:$0xff] %v2248
        %2265 = vst [vmem:[%s217 + $0x78] sm:$0xff] %v2249
        %s2266 = sand.u32 %s137, 1
        %s2267 = scalar_lea.sflag [#allocation4], %s2266
        %s2268 = sand.u32 %s137, 1
        %s2269 = smul.addr %s2268, 128
        %s2270 = scalar_lea.vmem [#allocation3], %s2269
        // Predicated region
        $region41: #{resblock3_child_forward.1} parent=39 // pred_check
          %p2271 = pneg %p147
        $region42: #{resblock3_child_forward.1} parent=39 // pred_check_branch
          %2273 = sbr.rel (%p2271) target = $region44
        $region43: #{resblock3_child_forward.1} parent=39 // pred_region
          %s2275 = ssub.s32 2048, 2048
          %2276 = vsyncadd %s2267, %s2275
          %s2277 = smul.addr %s19, 16
          %s2278 = smul.addr %s2277, 128
          %s2279 = scalar_lea.hbm %s5, %s2278
          %s2280 = sshll.u32 %s2270, 4
          %s2281 = int_to_ptr.vmem [resolvable:$true] %s2280
          %2286 = dma.vmem_to_hbm [thread:$0]  %s2281, 2048, %s2279, %s2267, 256, 256, 16
        $region44: #{resblock3_child_forward.1} parent=39 // pred_fallthru
          _
      $region40: #{resblock3_child_forward.1} parent=5 // pred_fallthru
        _
      %p2287 = scmp.le.s32.totalorder 2, %s14
      // Predicated region
      $region45: #{resblock3_child_forward.1} parent=5 // pred_check
        %p2288 = pneg %p2287
      $region46: #{resblock3_child_forward.1} parent=5 // pred_check_branch
        %2290 = sbr.rel (%p2288) target = $region48
      $region47: #{resblock3_child_forward.1} parent=5 // pred_region
        %s2291 = ssub.s32 %s14, 2
        // Predicated region
        $region49: #{resblock3_child_forward.1} parent=47 // pred_check
          %p2292 = pneg %p153
        $region50: #{resblock3_child_forward.1} parent=47 // pred_check_branch
          %2294 = sbr.rel (%p2292) target = $region52
        $region51: #{resblock3_child_forward.1} parent=47 // pred_region
          %s2295 = sand.u32 %s138, 1
          %s2296 = scalar_lea.sflag [#allocation4], %s2295
          %s2297 = sand.u32 %s138, 1
          %s2298 = smul.addr %s2297, 128
          %s2299 = scalar_lea.vmem [#allocation3], %s2298
          %2300 = dma.done %s2296, 2048
        $region52: #{resblock3_child_forward.1} parent=47 // pred_fallthru
          _
      $region48: #{resblock3_child_forward.1} parent=5 // pred_fallthru
        _
    $region6: #{resblock3_child_forward.1} parent=1 // loop_footer
      %s18 = sadd.s32 1, %s14
    $region7: #{resblock3_child_forward.1} parent=1 // loop_footer_branch
      %13 = sbr.rel target = $region3
    $region8: #{resblock3_child_forward.1} parent=1 // loop_exit
      _
    %2301 = vsyncpa [#allocation4], 1
    %s2302 = scalar_lea.sflag [#allocation4], 1
    %2303 = vsyncpa %s2302, 1

</llo_original>
